<compile_context>
chip_gen: v7x
topology: tpu7x:2x2x1
jax: 0.10.0
libtpu: 0.0.40
codegen_flags: <defaults>
</compile_context>

<pallas_src>
import jax
import jax.numpy as jnp
from jax import lax
from jax.experimental import pallas as pl
from jax.experimental.pallas import tpu as pltpu

EXPANSION = 4
EPS = 1e-5
LANE = 128


def _round_up(v, m):
    return (v + m - 1) // m * m


# ---------------------------------------------------------------------------
# Kernels
# ---------------------------------------------------------------------------
def _make_kernel_s1(TO, W, n_row_tiles, has_proj):
    """stride == 1: grid = (batch, row-tiles); TO output rows per tile."""

    def kernel(x_ref, xt_ref, xb_ref,
               w1_ref, s1_ref, b1_ref, w2_ref, s2_ref, b2_ref,
               w3_ref, s3_ref, b3_ref, *rest):
        if has_proj:
            wsc_ref, ssc_ref, bsc_ref, out_ref, acc_ref = rest
        else:
            out_ref, acc_ref = rest

        r = pl.program_id(1)
        Cp = x_ref.shape[-1]
        Pp = w1_ref.shape[1]
        Pep = w3_ref.shape[1]

        # Rows r*TO-1 .. r*TO+TO (one halo row top and bottom), f32.
        x_main = x_ref[0]                                   # (TO, W, Cp)
        x_halo = jnp.concatenate([xt_ref[0], x_main, xb_ref[0]], axis=0)

        # ---- conv1 (1x1) + bn1 + relu (bf16 matmul, f32 epilogue) ---------
        h1 = jnp.dot(x_halo.reshape((TO + 2) * W, Cp).astype(jnp.bfloat16),
                     w1_ref[...], preferred_element_type=jnp.float32)
        h1 = jnp.maximum(h1 * s1_ref[...] + b1_ref[...], 0.0)
        h1 = h1.reshape(TO + 2, W, Pp)

        # Halo rows that fall outside the image are conv2's zero padding.
        top_keep = jnp.where(r == 0, 0.0, 1.0)
        bot_keep = jnp.where(r == n_row_tiles - 1, 0.0, 1.0)
        h1 = jnp.concatenate(
            [h1[0:1] * top_keep, h1[1:TO + 1], h1[TO + 1:TO + 2] * bot_keep],
            axis=0)

        # Width zero padding: one zero column on each side (value, no scratch).
        zcol = jnp.zeros((TO + 2, 1, Pp), jnp.float32)
        h1p = jnp.concatenate([zcol, h1, zcol], axis=1)     # (TO+2, W+2, Pp)

        # ---- conv2 (3x3, pad=1) + bn2 + relu ------------------------------
        # One matmul per kernel row; the three kw taps are fused along the
        # contraction axis (K = 3*Pp).  kh partials accumulate into a
        # persistent f32 VMEM scratch.
        for kh in range(3):
            rows = h1p[kh:kh + TO]                          # (TO, W+2, Pp)
            cat = jnp.concatenate(
                [rows[:, 0:W], rows[:, 1:W + 1], rows[:, 2:W + 2]], axis=-1)
            part = jnp.dot(cat.reshape(TO * W, 3 * Pp).astype(jnp.bfloat16),
                           w2_ref[kh], preferred_element_type=jnp.float32)
            if kh == 0:
                acc_ref[...] = part
            else:
                acc_ref[...] += part
        h2 = jnp.maximum(acc_ref[...] * s2_ref[...] + b2_ref[...], 0.0)

        # ---- conv3 (1x1) + bn3 --------------------------------------------
        h3 = jnp.dot(h2.astype(jnp.bfloat16), w3_ref[...],
                     preferred_element_type=jnp.float32)
        h3 = h3 * s3_ref[...] + b3_ref[...]

        # ---- shortcut + residual add + relu (f32) ---------------------------
        xm = x_main.reshape(TO * W, Cp)
        if has_proj:
            sc = jnp.dot(xm.astype(jnp.bfloat16), wsc_ref[...],
                         preferred_element_type=jnp.float32)
            sc = sc * ssc_ref[...] + bsc_ref[...]
        else:
            sc = xm                                          # Cp == Pep here
        out_ref[...] = jnp.maximum(h3 + sc, 0.0).reshape(1, TO, W, Pep)

    return kernel


def _make_kernel_strided(stride, H, W, Ho, Wo):
    """stride > 1 (always has a projection shortcut): grid = (batch,).

    The strided tap selection uses strided ref reads (pl.ds with stride)
    rather than strided slices of loaded values.
    TODO(synk): stride>1 path is not exercised by the self-test below.
    """

    def kernel(x_ref,
               w1_ref, s1_ref, b1_ref, w2_ref, s2_ref, b2_ref,
               w3_ref, s3_ref, b3_ref,
               wsc_ref, ssc_ref, bsc_ref, out_ref, h1p_ref, acc_ref):
        Cp = x_ref.shape[-1]
        Pp = w1_ref.shape[1]
        Pep = w3_ref.shape[1]

        x = x_ref[0]                                        # (H, W, Cp) f32
        h1 = jnp.dot(x.reshape(H * W, Cp).astype(jnp.bfloat16), w1_ref[...],
                     preferred_element_type=jnp.float32)
        h1 = jnp.maximum(h1 * s1_ref[...] + b1_ref[...], 0.0)

        # Zero-padded h1 in a VMEM scratch so taps can be read with pl.ds.
        h1p_ref[...] = jnp.zeros(h1p_ref.shape, h1p_ref.dtype)
        h1p_ref[1:H + 1, 1:W + 1, :] = h1.reshape(H, W, Pp)

        for kh in range(3):
            cat = jnp.concatenate(
                [h1p_ref[pl.ds(kh, Ho, stride), pl.ds(kw, Wo, stride), :]
                 for kw in range(3)], axis=-1)              # (Ho, Wo, 3*Pp)
            part = jnp.dot(cat.reshape(Ho * Wo, 3 * Pp).astype(jnp.bfloat16),
                           w2_ref[kh], preferred_element_type=jnp.float32)
            if kh == 0:
                acc_ref[...] = part
            else:
                acc_ref[...] += part
        h2 = jnp.maximum(acc_ref[...] * s2_ref[...] + b2_ref[...], 0.0)

        h3 = jnp.dot(h2.astype(jnp.bfloat16), w3_ref[...],
                     preferred_element_type=jnp.float32)
        h3 = h3 * s3_ref[...] + b3_ref[...]

        xs = x_ref[0, pl.ds(0, Ho, stride), pl.ds(0, Wo, stride), :]
        sc = jnp.dot(xs.reshape(Ho * Wo, Cp).astype(jnp.bfloat16),
                     wsc_ref[...], preferred_element_type=jnp.float32)
        sc = sc * ssc_ref[...] + bsc_ref[...]

        out_ref[...] = jnp.maximum(h3 + sc, 0.0).reshape(1, Ho, Wo, Pep)

    return kernel


# ---------------------------------------------------------------------------
# Wrapper
# ---------------------------------------------------------------------------
def _fold_bn(bn, cpad):
    gamma, beta, mean, var = bn
    scale = gamma / jnp.sqrt(var + EPS)
    bias = beta - mean * scale
    scale = jnp.pad(scale, (0, cpad - scale.shape[0]))
    bias = jnp.pad(bias, (0, cpad - bias.shape[0]))
    return (scale.reshape(1, -1).astype(jnp.float32),
            bias.reshape(1, -1).astype(jnp.float32))


def _pad2(w, rows, cols):
    return jnp.pad(w, ((0, rows - w.shape[0]), (0, cols - w.shape[1])))


def bottleneck_forward(x_nchw, params, stride, row_tile=None):
    x = jnp.transpose(x_nchw, (0, 2, 3, 1)).astype(jnp.float32)   # NCHW -> NHWC
    N, H, W, Cin = x.shape
    P = params['conv1'].shape[0]
    Pe = EXPANSION * P
    Ho = (H + 2 - 3) // stride + 1
    Wo = (W + 2 - 3) // stride + 1
    has_proj = (stride != 1) or (Cin != Pe)

    # Lane-dense channel padding (multiples of 128).
    Cp = _round_up(Cin, LANE)
    Pp = _round_up(P, LANE)
    Pep = _round_up(Pe, LANE)
    if Cp != Cin:
        x = jnp.pad(x, ((0, 0), (0, 0), (0, 0), (0, Cp - Cin)))

    # Conv weights: PyTorch OIHW -> (in, out) matmul layouts, bf16.
    w1 = _pad2(params['conv1'][:, :, 0, 0].T, Cp, Pp).astype(jnp.bfloat16)
    w2 = jnp.stack([
        jnp.concatenate([_pad2(params['conv2'][:, :, kh, kw].T, Pp, Pp)
                         for kw in range(3)], axis=0)
        for kh in range(3)], axis=0).astype(jnp.bfloat16)          # (3, 3Pp, Pp)
    w3 = _pad2(params['conv3'][:, :, 0, 0].T, Pp, Pep).astype(jnp.bfloat16)
    s1, b1 = _fold_bn(params['bn1'], Pp)
    s2, b2 = _fold_bn(params['bn2'], Pp)
    s3, b3 = _fold_bn(params['bn3'], Pep)

    w_args = [w1, s1, b1, w2, s2, b2, w3, s3, b3]
    if has_proj:
        wsc = _pad2(params['conv_sc'][:, :, 0, 0].T, Cp, Pep).astype(jnp.bfloat16)
        ssc, bsc = _fold_bn(params['bn_sc'], Pep)
        w_args += [wsc, ssc, bsc]

    out_shape = jax.ShapeDtypeStruct((N, Ho, Wo, Pep), jnp.float32)

    if stride == 1:
        # Row-tile heuristic: ~<=4096 output pixels per tile keeps the per-tile
        # working set (x + halo + h1 + cat + acc + out, double-buffered) well
        # under v7x's 64 MiB VMEM even at real ResNet channel widths.
        if row_tile is None:
            cands = [t for t in range(1, Ho + 1)
                     if Ho % t == 0 and t * W <= 4096]
            row_tile = max(cands) if cands else 1
        TO = row_tile
        assert Ho % TO == 0, (Ho, TO)
        RT = Ho // TO
        grid = (N, RT)

        def full_spec(a):
            nd = a.ndim
            return pl.BlockSpec(a.shape, lambda n, r, _nd=nd: (0,) * _nd)

        in_specs = (
            [pl.BlockSpec((1, TO, W, Cp), lambda n, r: (n, r, 0, 0)),
             pl.BlockSpec((1, 1, W, Cp),
                          lambda n, r: (n, jnp.maximum(r * TO - 1, 0), 0, 0)),
             pl.BlockSpec((1, 1, W, Cp),
                          lambda n, r: (n, jnp.minimum(r * TO + TO, H - 1), 0, 0))]
            + [full_spec(a) for a in w_args])
        out_specs = pl.BlockSpec((1, TO, W, Pep), lambda n, r: (n, r, 0, 0))
        kernel = _make_kernel_s1(TO, W, RT, has_proj)
        scratch_shapes = [pltpu.VMEM((TO * W, Pp), jnp.float32)]
        inputs = [x, x, x] + w_args
        dims = ("parallel", "parallel")
    else:
        grid = (N,)

        def full_spec(a):
            nd = a.ndim
            return pl.BlockSpec(a.shape, lambda n, _nd=nd: (0,) * _nd)

        in_specs = ([pl.BlockSpec((1, H, W, Cp), lambda n: (n, 0, 0, 0))]
                    + [full_spec(a) for a in w_args])
        out_specs = pl.BlockSpec((1, Ho, Wo, Pep), lambda n: (n, 0, 0, 0))
        kernel = _make_kernel_strided(stride, H, W, Ho, Wo)
        scratch_shapes = [pltpu.VMEM((H + 2, W + 2, Pp), jnp.float32),
                          pltpu.VMEM((Ho * Wo, Pp), jnp.float32)]
        inputs = [x] + w_args
        dims = ("parallel",)

    y = pl.pallas_call(
        kernel,
        out_shape=out_shape,
        grid=grid,
        in_specs=in_specs,
        out_specs=out_specs,
        scratch_shapes=scratch_shapes,
        compiler_params=pltpu.CompilerParams(
            dimension_semantics=dims,
            vmem_limit_bytes=32 * 1024 * 1024),
    )(*inputs)

    y = y[..., :Pe]                                        # drop channel padding
    return jnp.transpose(y, (0, 3, 1, 2))                  # NHWC -> NCHW


# ---------------------------------------------------------------------------
# Parameter init + pure-JAX reference (PyTorch eval-mode semantics)
# ---------------------------------------------------------------------------
def init_params(key, in_planes, planes, stride):
    Pe = EXPANSION * planes
    ks = jax.random.split(key, 8)

    def conv_w(k, shape):
        return 0.1 * jax.random.normal(k, shape, jnp.float32)

    def bn(k, c):
        kk = jax.random.split(k, 4)
        gamma = 1.0 + 0.1 * jax.random.normal(kk[0], (c,), jnp.float32)
        beta = 0.1 * jax.random.normal(kk[1], (c,), jnp.float32)
        mean = 0.1 * jax.random.normal(kk[2], (c,), jnp.float32)
        var = jnp.abs(jax.random.normal(kk[3], (c,), jnp.float32)) + 0.5
        return gamma, beta, mean, var

    params = {
        'conv1': conv_w(ks[0], (planes, in_planes, 1, 1)),
        'bn1': bn(ks[1], planes),
        'conv2': conv_w(ks[2], (planes, planes, 3, 3)),
        'bn2': bn(ks[3], planes),
        'conv3': conv_w(ks[4], (Pe, planes, 1, 1)),
        'bn3': bn(ks[5], Pe),
    }
    if stride != 1 or in_planes != Pe:
        params['conv_sc'] = conv_w(ks[6], (Pe, in_planes, 1, 1))
        params['bn_sc'] = bn(ks[7], Pe)
    return params


def ref_forward(x, params, stride):
    def conv(x, w, s=1, pad=0):
        return lax.conv_general_dilated(
            x, w, (s, s), [(pad, pad), (pad, pad)],
            dimension_numbers=('NCHW', 'OIHW', 'NCHW'))

    def bn(x, p):
        g, b, m, v = p
        g, b, m, v = (t[None, :, None, None] for t in (g, b, m, v))
        return (x - m) / jnp.sqrt(v + EPS) * g + b

    out = jax.nn.relu(bn(conv(x, params['conv1']), params['bn1']))
    out = jax.nn.relu(bn(conv(out, params['conv2'], stride, 1), params['bn2']))
    out = bn(conv(out, params['conv3']), params['bn3'])
    if 'conv_sc' in params:
        sc = bn(conv(x, params['conv_sc'], stride), params['bn_sc'])
    else:
        sc = x
    return jax.nn.relu(out + sc)


if __name__ == "__main__":
    key = jax.random.PRNGKey(0)
    kx1, kx2, kp1, kp2 = jax.random.split(key, 4)

    # Case 1: projection shortcut (in_planes != expansion*planes), stride=1,
    # two row tiles so the halo logic is exercised.
    in_planes, planes, stride = 16, 8, 1
    x1 = jax.random.normal(kx1, (2, in_planes, 8, 8), jnp.float32)   # NCHW
    p1 = init_params(kp1, in_planes, planes, stride)
    y1 = jax.block_until_ready(bottleneck_forward(x1, p1, stride, row_tile=4))
    r1 = ref_forward(x1, p1, stride)
    assert y1.shape == r1.shape, (y1.shape, r1.shape)
    assert jnp.allclose(y1, r1, atol=5e-2, rtol=5e-2), \
        float(jnp.max(jnp.abs(y1 - r1)))

    # Case 2: identity shortcut (in_planes == expansion*planes), stride=1.
    in_planes2, planes2 = 32, 8
    x2 = jax.random.normal(kx2, (2, in_planes2, 8, 8), jnp.float32)
    p2 = init_params(kp2, in_planes2, planes2, 1)
    y2 = jax.block_until_ready(bottleneck_forward(x2, p2, 1, row_tile=4))
    r2 = ref_forward(x2, p2, 1)
    assert y2.shape == r2.shape, (y2.shape, r2.shape)
    assert jnp.allclose(y2, r2, atol=5e-2, rtol=5e-2), \
        float(jnp.max(jnp.abs(y2 - r2)))

    print("KERNEL_OK")
</pallas_src>

<mosaic_0001>
module attributes {stable_mosaic.version = 11 : i64} {
  func.func @kernel(%arg0: i32, %arg1: i32, %arg2: memref<1x4x8x128xf32, #tpu.memory_space<vmem>>, %arg3: memref<1x1x8x128xf32, #tpu.memory_space<vmem>>, %arg4: memref<1x1x8x128xf32, #tpu.memory_space<vmem>>, %arg5: memref<128x128xbf16, #tpu.memory_space<vmem>>, %arg6: memref<1x128xf32, #tpu.memory_space<vmem>>, %arg7: memref<1x128xf32, #tpu.memory_space<vmem>>, %arg8: memref<3x384x128xbf16, #tpu.memory_space<vmem>>, %arg9: memref<1x128xf32, #tpu.memory_space<vmem>>, %arg10: memref<1x128xf32, #tpu.memory_space<vmem>>, %arg11: memref<128x128xbf16, #tpu.memory_space<vmem>>, %arg12: memref<1x128xf32, #tpu.memory_space<vmem>>, %arg13: memref<1x128xf32, #tpu.memory_space<vmem>>, %arg14: memref<128x128xbf16, #tpu.memory_space<vmem>>, %arg15: memref<1x128xf32, #tpu.memory_space<vmem>>, %arg16: memref<1x128xf32, #tpu.memory_space<vmem>>, %arg17: memref<1x4x8x128xf32, #tpu.memory_space<vmem>>, %arg18: memref<32x128xf32, #tpu.memory_space<vmem>>) attributes {dimension_semantics = [#tpu.dimension_semantics<parallel>, #tpu.dimension_semantics<parallel>], iteration_bounds = array<i64: 2, 2>, scalar_prefetch = 0 : i64, scratch_operands = 1 : i64, tpu.core_type = #tpu.core_type<tc>, window_params = [{transform_indices = @transform_0, window_bounds = array<i64: 1, 4, 8, 128>}, {transform_indices = @transform_1, window_bounds = array<i64: 1, 1, 8, 128>}, {transform_indices = @transform_2, window_bounds = array<i64: 1, 1, 8, 128>}, {pipeline_mode = #tpu.pipeline_mode<synchronous>, transform_indices = @transform_3, window_bounds = array<i64: 128, 128>}, {pipeline_mode = #tpu.pipeline_mode<synchronous>, transform_indices = @transform_4, window_bounds = array<i64: 1, 128>}, {pipeline_mode = #tpu.pipeline_mode<synchronous>, transform_indices = @transform_5, window_bounds = array<i64: 1, 128>}, {pipeline_mode = #tpu.pipeline_mode<synchronous>, transform_indices = @transform_6, window_bounds = array<i64: 3, 384, 128>}, {pipeline_mode = #tpu.pipeline_mode<synchronous>, transform_indices = @transform_7, window_bounds = array<i64: 1, 128>}, {pipeline_mode = #tpu.pipeline_mode<synchronous>, transform_indices = @transform_8, window_bounds = array<i64: 1, 128>}, {pipeline_mode = #tpu.pipeline_mode<synchronous>, transform_indices = @transform_9, window_bounds = array<i64: 128, 128>}, {pipeline_mode = #tpu.pipeline_mode<synchronous>, transform_indices = @transform_10, window_bounds = array<i64: 1, 128>}, {pipeline_mode = #tpu.pipeline_mode<synchronous>, transform_indices = @transform_11, window_bounds = array<i64: 1, 128>}, {pipeline_mode = #tpu.pipeline_mode<synchronous>, transform_indices = @transform_12, window_bounds = array<i64: 128, 128>}, {pipeline_mode = #tpu.pipeline_mode<synchronous>, transform_indices = @transform_13, window_bounds = array<i64: 1, 128>}, {pipeline_mode = #tpu.pipeline_mode<synchronous>, transform_indices = @transform_14, window_bounds = array<i64: 1, 128>}, {transform_indices = @transform_15, window_bounds = array<i64: 1, 4, 8, 128>}]} {
    %c0 = arith.constant 0 : index
    %c0_0 = arith.constant 0 : index
    %c0_1 = arith.constant 0 : index
    %c0_2 = arith.constant 0 : index
    %0 = vector.load %arg2[%c0, %c0_0, %c0_1, %c0_2] : memref<1x4x8x128xf32, #tpu.memory_space<vmem>>, vector<1x4x8x128xf32>
    %1 = vector.shape_cast %0 : vector<1x4x8x128xf32> to vector<4x8x128xf32>
    %c0_3 = arith.constant 0 : index
    %c0_4 = arith.constant 0 : index
    %c0_5 = arith.constant 0 : index
    %c0_6 = arith.constant 0 : index
    %2 = vector.load %arg3[%c0_3, %c0_4, %c0_5, %c0_6] : memref<1x1x8x128xf32, #tpu.memory_space<vmem>>, vector<1x1x8x128xf32>
    %3 = vector.shape_cast %2 : vector<1x1x8x128xf32> to vector<1x8x128xf32>
    %c0_7 = arith.constant 0 : index
    %c0_8 = arith.constant 0 : index
    %c0_9 = arith.constant 0 : index
    %c0_10 = arith.constant 0 : index
    %4 = vector.load %arg4[%c0_7, %c0_8, %c0_9, %c0_10] : memref<1x1x8x128xf32, #tpu.memory_space<vmem>>, vector<1x1x8x128xf32>
    %5 = vector.shape_cast %4 : vector<1x1x8x128xf32> to vector<1x8x128xf32>
    %6 = tpu.concatenate %3, %1, %5 in 0 : vector<1x8x128xf32>, vector<4x8x128xf32>, vector<1x8x128xf32> -> vector<6x8x128xf32>
    %7 = vector.shape_cast %6 : vector<6x8x128xf32> to vector<48x128xf32>
    %8 = arith.truncf %7 : vector<48x128xf32> to vector<48x128xbf16>
    %c0_11 = arith.constant 0 : index
    %c0_12 = arith.constant 0 : index
    %9 = vector.load %arg5[%c0_11, %c0_12] : memref<128x128xbf16, #tpu.memory_space<vmem>>, vector<128x128xbf16>
    %cst = arith.constant dense<0.000000e+00> : vector<48x128xf32>
    %10 = tpu.matmul %8, %9, %cst {dimension_numbers = #tpu.dot_dimension_numbers<[1], [0], [0], [1], [0, 0, 1, 1], [], []>} : vector<48x128xbf16>, vector<128x128xbf16>, vector<48x128xf32> -> vector<48x128xf32>
    %c0_13 = arith.constant 0 : index
    %c0_14 = arith.constant 0 : index
    %11 = vector.load %arg6[%c0_13, %c0_14] : memref<1x128xf32, #tpu.memory_space<vmem>>, vector<1x128xf32>
    %12 = vector.broadcast %11 : vector<1x128xf32> to vector<48x128xf32>
    %13 = arith.mulf %10, %12 : vector<48x128xf32>
    %c0_15 = arith.constant 0 : index
    %c0_16 = arith.constant 0 : index
    %14 = vector.load %arg7[%c0_15, %c0_16] : memref<1x128xf32, #tpu.memory_space<vmem>>, vector<1x128xf32>
    %15 = vector.broadcast %14 : vector<1x128xf32> to vector<48x128xf32>
    %16 = arith.addf %13, %15 : vector<48x128xf32>
    %cst_17 = arith.constant 0.000000e+00 : f32
    %17 = vector.broadcast %cst_17 : f32 to vector<48x128xf32>
    %18 = arith.maximumf %16, %17 : vector<48x128xf32>
    %19 = vector.shape_cast %18 : vector<48x128xf32> to vector<6x8x128xf32>
    %c0_i32 = arith.constant 0 : i32
    %20 = arith.cmpi eq, %arg1, %c0_i32 : i32
    %cst_18 = arith.constant 0.000000e+00 : f32
    %cst_19 = arith.constant 1.000000e+00 : f32
    %21 = arith.select %20, %cst_18, %cst_19 : f32
    %c1_i32 = arith.constant 1 : i32
    %22 = arith.cmpi eq, %arg1, %c1_i32 : i32
    %cst_20 = arith.constant 0.000000e+00 : f32
    %cst_21 = arith.constant 1.000000e+00 : f32
    %23 = arith.select %22, %cst_20, %cst_21 : f32
    %24 = vector.extract_strided_slice %19 {offsets = [0, 0, 0], sizes = [1, 8, 128], strides = [1, 1, 1]} : vector<6x8x128xf32> to vector<1x8x128xf32>
    %25 = vector.broadcast %21 : f32 to vector<1x8x128xf32>
    %26 = arith.mulf %24, %25 : vector<1x8x128xf32>
    %27 = vector.extract_strided_slice %19 {offsets = [1, 0, 0], sizes = [4, 8, 128], strides = [1, 1, 1]} : vector<6x8x128xf32> to vector<4x8x128xf32>
    %28 = vector.extract_strided_slice %19 {offsets = [5, 0, 0], sizes = [1, 8, 128], strides = [1, 1, 1]} : vector<6x8x128xf32> to vector<1x8x128xf32>
    %29 = vector.broadcast %23 : f32 to vector<1x8x128xf32>
    %30 = arith.mulf %28, %29 : vector<1x8x128xf32>
    %31 = tpu.concatenate %26, %27, %30 in 0 : vector<1x8x128xf32>, vector<4x8x128xf32>, vector<1x8x128xf32> -> vector<6x8x128xf32>
    %cst_22 = arith.constant 0.000000e+00 : f32
    %32 = vector.broadcast %cst_22 : f32 to vector<6x1x128xf32>
    %33 = tpu.concatenate %32, %31, %32 in 1 : vector<6x1x128xf32>, vector<6x8x128xf32>, vector<6x1x128xf32> -> vector<6x10x128xf32>
    %34 = vector.extract_strided_slice %33 {offsets = [0, 0, 0], sizes = [4, 10, 128], strides = [1, 1, 1]} : vector<6x10x128xf32> to vector<4x10x128xf32>
    %35 = vector.extract_strided_slice %34 {offsets = [0, 0, 0], sizes = [4, 8, 128], strides = [1, 1, 1]} : vector<4x10x128xf32> to vector<4x8x128xf32>
    %36 = vector.extract_strided_slice %34 {offsets = [0, 1, 0], sizes = [4, 8, 128], strides = [1, 1, 1]} : vector<4x10x128xf32> to vector<4x8x128xf32>
    %37 = vector.extract_strided_slice %34 {offsets = [0, 2, 0], sizes = [4, 8, 128], strides = [1, 1, 1]} : vector<4x10x128xf32> to vector<4x8x128xf32>
    %38 = tpu.concatenate %35, %36, %37 in 2 : vector<4x8x128xf32>, vector<4x8x128xf32>, vector<4x8x128xf32> -> vector<4x8x384xf32>
    %39 = vector.shape_cast %38 : vector<4x8x384xf32> to vector<32x384xf32>
    %40 = arith.truncf %39 : vector<32x384xf32> to vector<32x384xbf16>
    %c0_23 = arith.constant 0 : index
    %c0_24 = arith.constant 0 : index
    %c0_25 = arith.constant 0 : index
    %41 = vector.load %arg8[%c0_23, %c0_24, %c0_25] : memref<3x384x128xbf16, #tpu.memory_space<vmem>>, vector<1x384x128xbf16>
    %42 = vector.shape_cast %41 : vector<1x384x128xbf16> to vector<384x128xbf16>
    %cst_26 = arith.constant dense<0.000000e+00> : vector<32x128xf32>
    %43 = tpu.matmul %40, %42, %cst_26 {dimension_numbers = #tpu.dot_dimension_numbers<[1], [0], [0], [1], [0, 0, 1, 1], [], []>} : vector<32x384xbf16>, vector<384x128xbf16>, vector<32x128xf32> -> vector<32x128xf32>
    %c0_27 = arith.constant 0 : index
    %c0_28 = arith.constant 0 : index
    %44 = vector.load %arg18[%c0_27, %c0_28] : memref<32x128xf32, #tpu.memory_space<vmem>>, vector<32x128xf32>
    tpu.vector_store %arg18[%c0_27, %c0_28], %43 {strides = array<i32>} : memref<32x128xf32, #tpu.memory_space<vmem>>, vector<32x128xf32>,
    %45 = vector.extract_strided_slice %33 {offsets = [1, 0, 0], sizes = [4, 10, 128], strides = [1, 1, 1]} : vector<6x10x128xf32> to vector<4x10x128xf32>
    %46 = vector.extract_strided_slice %45 {offsets = [0, 0, 0], sizes = [4, 8, 128], strides = [1, 1, 1]} : vector<4x10x128xf32> to vector<4x8x128xf32>
    %47 = vector.extract_strided_slice %45 {offsets = [0, 1, 0], sizes = [4, 8, 128], strides = [1, 1, 1]} : vector<4x10x128xf32> to vector<4x8x128xf32>
    %48 = vector.extract_strided_slice %45 {offsets = [0, 2, 0], sizes = [4, 8, 128], strides = [1, 1, 1]} : vector<4x10x128xf32> to vector<4x8x128xf32>
    %49 = tpu.concatenate %46, %47, %48 in 2 : vector<4x8x128xf32>, vector<4x8x128xf32>, vector<4x8x128xf32> -> vector<4x8x384xf32>
    %50 = vector.shape_cast %49 : vector<4x8x384xf32> to vector<32x384xf32>
    %51 = arith.truncf %50 : vector<32x384xf32> to vector<32x384xbf16>
    %c1 = arith.constant 1 : index
    %c0_29 = arith.constant 0 : index
    %c0_30 = arith.constant 0 : index
    %52 = vector.load %arg8[%c1, %c0_29, %c0_30] : memref<3x384x128xbf16, #tpu.memory_space<vmem>>, vector<1x384x128xbf16>
    %53 = vector.shape_cast %52 : vector<1x384x128xbf16> to vector<384x128xbf16>
    %cst_31 = arith.constant dense<0.000000e+00> : vector<32x128xf32>
    %54 = tpu.matmul %51, %53, %cst_31 {dimension_numbers = #tpu.dot_dimension_numbers<[1], [0], [0], [1], [0, 0, 1, 1], [], []>} : vector<32x384xbf16>, vector<384x128xbf16>, vector<32x128xf32> -> vector<32x128xf32>
    %c0_32 = arith.constant 0 : index
    %c0_33 = arith.constant 0 : index
    %55 = vector.load %arg18[%c0_32, %c0_33] : memref<32x128xf32, #tpu.memory_space<vmem>>, vector<32x128xf32>
    %56 = arith.addf %55, %54 : vector<32x128xf32>
    %c0_34 = arith.constant 0 : index
    %c0_35 = arith.constant 0 : index
    %57 = vector.load %arg18[%c0_34, %c0_35] : memref<32x128xf32, #tpu.memory_space<vmem>>, vector<32x128xf32>
    tpu.vector_store %arg18[%c0_34, %c0_35], %56 {strides = array<i32>} : memref<32x128xf32, #tpu.memory_space<vmem>>, vector<32x128xf32>,
    %58 = vector.extract_strided_slice %33 {offsets = [2, 0, 0], sizes = [4, 10, 128], strides = [1, 1, 1]} : vector<6x10x128xf32> to vector<4x10x128xf32>
    %59 = vector.extract_strided_slice %58 {offsets = [0, 0, 0], sizes = [4, 8, 128], strides = [1, 1, 1]} : vector<4x10x128xf32> to vector<4x8x128xf32>
    %60 = vector.extract_strided_slice %58 {offsets = [0, 1, 0], sizes = [4, 8, 128], strides = [1, 1, 1]} : vector<4x10x128xf32> to vector<4x8x128xf32>
    %61 = vector.extract_strided_slice %58 {offsets = [0, 2, 0], sizes = [4, 8, 128], strides = [1, 1, 1]} : vector<4x10x128xf32> to vector<4x8x128xf32>
    %62 = tpu.concatenate %59, %60, %61 in 2 : vector<4x8x128xf32>, vector<4x8x128xf32>, vector<4x8x128xf32> -> vector<4x8x384xf32>
    %63 = vector.shape_cast %62 : vector<4x8x384xf32> to vector<32x384xf32>
    %64 = arith.truncf %63 : vector<32x384xf32> to vector<32x384xbf16>
    %c2 = arith.constant 2 : index
    %c0_36 = arith.constant 0 : index
    %c0_37 = arith.constant 0 : index
    %65 = vector.load %arg8[%c2, %c0_36, %c0_37] : memref<3x384x128xbf16, #tpu.memory_space<vmem>>, vector<1x384x128xbf16>
    %66 = vector.shape_cast %65 : vector<1x384x128xbf16> to vector<384x128xbf16>
    %cst_38 = arith.constant dense<0.000000e+00> : vector<32x128xf32>
    %67 = tpu.matmul %64, %66, %cst_38 {dimension_numbers = #tpu.dot_dimension_numbers<[1], [0], [0], [1], [0, 0, 1, 1], [], []>} : vector<32x384xbf16>, vector<384x128xbf16>, vector<32x128xf32> -> vector<32x128xf32>
    %c0_39 = arith.constant 0 : index
    %c0_40 = arith.constant 0 : index
    %68 = vector.load %arg18[%c0_39, %c0_40] : memref<32x128xf32, #tpu.memory_space<vmem>>, vector<32x128xf32>
    %69 = arith.addf %68, %67 : vector<32x128xf32>
    %c0_41 = arith.constant 0 : index
    %c0_42 = arith.constant 0 : index
    %70 = vector.load %arg18[%c0_41, %c0_42] : memref<32x128xf32, #tpu.memory_space<vmem>>, vector<32x128xf32>
    tpu.vector_store %arg18[%c0_41, %c0_42], %69 {strides = array<i32>} : memref<32x128xf32, #tpu.memory_space<vmem>>, vector<32x128xf32>,
    %c0_43 = arith.constant 0 : index
    %c0_44 = arith.constant 0 : index
    %71 = vector.load %arg18[%c0_43, %c0_44] : memref<32x128xf32, #tpu.memory_space<vmem>>, vector<32x128xf32>
    %c0_45 = arith.constant 0 : index
    %c0_46 = arith.constant 0 : index
    %72 = vector.load %arg9[%c0_45, %c0_46] : memref<1x128xf32, #tpu.memory_space<vmem>>, vector<1x128xf32>
    %73 = vector.broadcast %72 : vector<1x128xf32> to vector<32x128xf32>
    %74 = arith.mulf %71, %73 : vector<32x128xf32>
    %c0_47 = arith.constant 0 : index
    %c0_48 = arith.constant 0 : index
    %75 = vector.load %arg10[%c0_47, %c0_48] : memref<1x128xf32, #tpu.memory_space<vmem>>, vector<1x128xf32>
    %76 = vector.broadcast %75 : vector<1x128xf32> to vector<32x128xf32>
    %77 = arith.addf %74, %76 : vector<32x128xf32>
    %cst_49 = arith.constant 0.000000e+00 : f32
    %78 = vector.broadcast %cst_49 : f32 to vector<32x128xf32>
    %79 = arith.maximumf %77, %78 : vector<32x128xf32>
    %80 = arith.truncf %79 : vector<32x128xf32> to vector<32x128xbf16>
    %c0_50 = arith.constant 0 : index
    %c0_51 = arith.constant 0 : index
    %81 = vector.load %arg11[%c0_50, %c0_51] : memref<128x128xbf16, #tpu.memory_space<vmem>>, vector<128x128xbf16>
    %cst_52 = arith.constant dense<0.000000e+00> : vector<32x128xf32>
    %82 = tpu.matmul %80, %81, %cst_52 {dimension_numbers = #tpu.dot_dimension_numbers<[1], [0], [0], [1], [0, 0, 1, 1], [], []>} : vector<32x128xbf16>, vector<128x128xbf16>, vector<32x128xf32> -> vector<32x128xf32>
    %c0_53 = arith.constant 0 : index
    %c0_54 = arith.constant 0 : index
    %83 = vector.load %arg12[%c0_53, %c0_54] : memref<1x128xf32, #tpu.memory_space<vmem>>, vector<1x128xf32>
    %84 = vector.broadcast %83 : vector<1x128xf32> to vector<32x128xf32>
    %85 = arith.mulf %82, %84 : vector<32x128xf32>
    %c0_55 = arith.constant 0 : index
    %c0_56 = arith.constant 0 : index
    %86 = vector.load %arg13[%c0_55, %c0_56] : memref<1x128xf32, #tpu.memory_space<vmem>>, vector<1x128xf32>
    %87 = vector.broadcast %86 : vector<1x128xf32> to vector<32x128xf32>
    %88 = arith.addf %85, %87 : vector<32x128xf32>
    %89 = vector.shape_cast %1 : vector<4x8x128xf32> to vector<32x128xf32>
    %90 = arith.truncf %89 : vector<32x128xf32> to vector<32x128xbf16>
    %c0_57 = arith.constant 0 : index
    %c0_58 = arith.constant 0 : index
    %91 = vector.load %arg14[%c0_57, %c0_58] : memref<128x128xbf16, #tpu.memory_space<vmem>>, vector<128x128xbf16>
    %cst_59 = arith.constant dense<0.000000e+00> : vector<32x128xf32>
    %92 = tpu.matmul %90, %91, %cst_59 {dimension_numbers = #tpu.dot_dimension_numbers<[1], [0], [0], [1], [0, 0, 1, 1], [], []>} : vector<32x128xbf16>, vector<128x128xbf16>, vector<32x128xf32> -> vector<32x128xf32>
    %c0_60 = arith.constant 0 : index
    %c0_61 = arith.constant 0 : index
    %93 = vector.load %arg15[%c0_60, %c0_61] : memref<1x128xf32, #tpu.memory_space<vmem>>, vector<1x128xf32>
    %94 = vector.broadcast %93 : vector<1x128xf32> to vector<32x128xf32>
    %95 = arith.mulf %92, %94 : vector<32x128xf32>
    %c0_62 = arith.constant 0 : index
    %c0_63 = arith.constant 0 : index
    %96 = vector.load %arg16[%c0_62, %c0_63] : memref<1x128xf32, #tpu.memory_space<vmem>>, vector<1x128xf32>
    %97 = vector.broadcast %96 : vector<1x128xf32> to vector<32x128xf32>
    %98 = arith.addf %95, %97 : vector<32x128xf32>
    %99 = arith.addf %88, %98 : vector<32x128xf32>
    %cst_64 = arith.constant 0.000000e+00 : f32
    %100 = vector.broadcast %cst_64 : f32 to vector<32x128xf32>
    %101 = arith.maximumf %99, %100 : vector<32x128xf32>
    %102 = vector.shape_cast %101 : vector<32x128xf32> to vector<1x4x8x128xf32>
    %c0_65 = arith.constant 0 : index
    %c0_66 = arith.constant 0 : index
    %c0_67 = arith.constant 0 : index
    %c0_68 = arith.constant 0 : index
    %103 = vector.load %arg17[%c0_65, %c0_66, %c0_67, %c0_68] : memref<1x4x8x128xf32, #tpu.memory_space<vmem>>, vector<1x4x8x128xf32>
    tpu.vector_store %arg17[%c0_65, %c0_66, %c0_67, %c0_68], %102 {strides = array<i32>} : memref<1x4x8x128xf32, #tpu.memory_space<vmem>>, vector<1x4x8x128xf32>,
    return
  }
  func.func @transform_0(%arg0: i32, %arg1: i32) -> (i32, i32, i32, i32) {
    %c0_i32 = arith.constant 0 : i32
    %c0_i32_0 = arith.constant 0 : i32
    %c0_i32_1 = arith.constant 0 : i32
    return %arg0, %arg1, %c0_i32, %c0_i32_0 : i32, i32, i32, i32
  }
  func.func @transform_1(%arg0: i32, %arg1: i32) -> (i32, i32, i32, i32) {
    %c4_i32 = arith.constant 4 : i32
    %0 = arith.muli %arg1, %c4_i32 : i32
    %c1_i32 = arith.constant 1 : i32
    %1 = arith.subi %0, %c1_i32 : i32
    %c0_i32 = arith.constant 0 : i32
    %2 = arith.maxsi %1, %c0_i32 : i32
    %c0_i32_0 = arith.constant 0 : i32
    %c0_i32_1 = arith.constant 0 : i32
    %c0_i32_2 = arith.constant 0 : i32
    return %arg0, %2, %c0_i32_0, %c0_i32_1 : i32, i32, i32, i32
  }
  func.func @transform_2(%arg0: i32, %arg1: i32) -> (i32, i32, i32, i32) {
    %c4_i32 = arith.constant 4 : i32
    %0 = arith.muli %arg1, %c4_i32 : i32
    %c4_i32_0 = arith.constant 4 : i32
    %1 = arith.addi %0, %c4_i32_0 : i32
    %c7_i32 = arith.constant 7 : i32
    %2 = arith.minsi %1, %c7_i32 : i32
    %c0_i32 = arith.constant 0 : i32
    %c0_i32_1 = arith.constant 0 : i32
    %c0_i32_2 = arith.constant 0 : i32
    return %arg0, %2, %c0_i32, %c0_i32_1 : i32, i32, i32, i32
  }
  func.func @transform_3(%arg0: i32, %arg1: i32) -> (i32, i32) {
    %c0_i32 = arith.constant 0 : i32
    %c0_i32_0 = arith.constant 0 : i32
    %c0_i32_1 = arith.constant 0 : i32
    return %c0_i32, %c0_i32_0 : i32, i32
  }
  func.func @transform_4(%arg0: i32, %arg1: i32) -> (i32, i32) {
    %c0_i32 = arith.constant 0 : i32
    %c0_i32_0 = arith.constant 0 : i32
    %c0_i32_1 = arith.constant 0 : i32
    return %c0_i32, %c0_i32_0 : i32, i32
  }
  func.func @transform_5(%arg0: i32, %arg1: i32) -> (i32, i32) {
    %c0_i32 = arith.constant 0 : i32
    %c0_i32_0 = arith.constant 0 : i32
    %c0_i32_1 = arith.constant 0 : i32
    return %c0_i32, %c0_i32_0 : i32, i32
  }
  func.func @transform_6(%arg0: i32, %arg1: i32) -> (i32, i32, i32) {
    %c0_i32 = arith.constant 0 : i32
    %c0_i32_0 = arith.constant 0 : i32
    %c0_i32_1 = arith.constant 0 : i32
    %c0_i32_2 = arith.constant 0 : i32
    return %c0_i32, %c0_i32_0, %c0_i32_1 : i32, i32, i32
  }
  func.func @transform_7(%arg0: i32, %arg1: i32) -> (i32, i32) {
    %c0_i32 = arith.constant 0 : i32
    %c0_i32_0 = arith.constant 0 : i32
    %c0_i32_1 = arith.constant 0 : i32
    return %c0_i32, %c0_i32_0 : i32, i32
  }
  func.func @transform_8(%arg0: i32, %arg1: i32) -> (i32, i32) {
    %c0_i32 = arith.constant 0 : i32
    %c0_i32_0 = arith.constant 0 : i32
    %c0_i32_1 = arith.constant 0 : i32
    return %c0_i32, %c0_i32_0 : i32, i32
  }
  func.func @transform_9(%arg0: i32, %arg1: i32) -> (i32, i32) {
    %c0_i32 = arith.constant 0 : i32
    %c0_i32_0 = arith.constant 0 : i32
    %c0_i32_1 = arith.constant 0 : i32
    return %c0_i32, %c0_i32_0 : i32, i32
  }
  func.func @transform_10(%arg0: i32, %arg1: i32) -> (i32, i32) {
    %c0_i32 = arith.constant 0 : i32
    %c0_i32_0 = arith.constant 0 : i32
    %c0_i32_1 = arith.constant 0 : i32
    return %c0_i32, %c0_i32_0 : i32, i32
  }
  func.func @transform_11(%arg0: i32, %arg1: i32) -> (i32, i32) {
    %c0_i32 = arith.constant 0 : i32
    %c0_i32_0 = arith.constant 0 : i32
    %c0_i32_1 = arith.constant 0 : i32
    return %c0_i32, %c0_i32_0 : i32, i32
  }
  func.func @transform_12(%arg0: i32, %arg1: i32) -> (i32, i32) {
    %c0_i32 = arith.constant 0 : i32
    %c0_i32_0 = arith.constant 0 : i32
    %c0_i32_1 = arith.constant 0 : i32
    return %c0_i32, %c0_i32_0 : i32, i32
  }
  func.func @transform_13(%arg0: i32, %arg1: i32) -> (i32, i32) {
    %c0_i32 = arith.constant 0 : i32
    %c0_i32_0 = arith.constant 0 : i32
    %c0_i32_1 = arith.constant 0 : i32
    return %c0_i32, %c0_i32_0 : i32, i32
  }
  func.func @transform_14(%arg0: i32, %arg1: i32) -> (i32, i32) {
    %c0_i32 = arith.constant 0 : i32
    %c0_i32_0 = arith.constant 0 : i32
    %c0_i32_1 = arith.constant 0 : i32
    return %c0_i32, %c0_i32_0 : i32, i32
  }
  func.func @transform_15(%arg0: i32, %arg1: i32) -> (i32, i32, i32, i32) {
    %c0_i32 = arith.constant 0 : i32
    %c0_i32_0 = arith.constant 0 : i32
    %c0_i32_1 = arith.constant 0 : i32
    return %arg0, %arg1, %c0_i32, %c0_i32_0 : i32, i32, i32, i32
  }
}

</mosaic_0001>

<llo_original>
// kernel: tpu_custom_call.1
$region0: #{tpu_custom_call.1}
  #allocation0 [shape = 'u32[]', space=smem, size = 0x4, offset = 0x4, fixed_abs, tag = 'smem constant byte address 0x4 - core index']
  #allocation1 [shape = 'u32[144,128]{1,0:T(1,128)}', space=vmem, size = 0x12000, scoped, tag = 'internal scratch']
  #allocation2 [shape = 'f32[32,128]{1,0:T(8,128)}', space=vmem, size = 0x4000, scoped, tag = 'scratch operand']
  %s0 = inlined_call_operand.hbm [shape: f32[2,8,8,128], index: 0, kind: input, shape index: {}]
  %s1 = inlined_call_operand.hbm [shape: f32[2,8,8,128], index: 1, kind: input, shape index: {}]
  %s2 = inlined_call_operand.hbm [shape: f32[2,8,8,128], index: 2, kind: input, shape index: {}]
  %s3 = inlined_call_operand.hbm [shape: bf16[128,128], index: 3, kind: input, shape index: {}]
  %s4 = inlined_call_operand.vmem [shape: f32[1,128], index: 4, kind: input, shape index: {}]
  %s5 = inlined_call_operand.vmem [shape: f32[1,128], index: 5, kind: input, shape index: {}]
  %s6 = inlined_call_operand.hbm [shape: bf16[3,384,128], index: 6, kind: input, shape index: {}]
  %s7 = inlined_call_operand.vmem [shape: f32[1,128], index: 7, kind: input, shape index: {}]
  %s8 = inlined_call_operand.vmem [shape: f32[1,128], index: 8, kind: input, shape index: {}]
  %s9 = inlined_call_operand.hbm [shape: bf16[128,128], index: 9, kind: input, shape index: {}]
  %s10 = inlined_call_operand.vmem [shape: f32[1,128], index: 10, kind: input, shape index: {}]
  %s11 = inlined_call_operand.vmem [shape: f32[1,128], index: 11, kind: input, shape index: {}]
  %s12 = inlined_call_operand.hbm [shape: bf16[128,128], index: 12, kind: input, shape index: {}]
  %s13 = inlined_call_operand.vmem [shape: f32[1,128], index: 13, kind: input, shape index: {}]
  %s14 = inlined_call_operand.vmem [shape: f32[1,128], index: 14, kind: input, shape index: {}]
  %s15 = inlined_call_operand.hbm [shape: f32[2,8,8,128], index: 15, kind: output, shape index: {}]
  %s16 = sld [smem:[#allocation0]]
  $region121: #{tpu_custom_call.1} parent=0
    _
  %s18 = ssub.s32 1, %s16
  %s19 = scalar_select 0, %s18, %s16
  $region1: #{tpu_custom_call.1} parent=0
    #allocation3 [shape = 'u8[32768]{0}', space=vmem, size = 0x8000, scoped, tag = 'input window, operand 0']
    #allocation4 [shape = 's32[2]{0}', space=sflag, size = 0x8, scoped, tag = 'scoped memory for tpu_custom_call.1']
    #allocation5 [shape = 's32[2]{0}', space=sflag, size = 0x8, scoped, tag = 'scoped memory for tpu_custom_call.1']
    #allocation6 [shape = 'u8[8192]{0}', space=vmem, size = 0x2000, scoped, tag = 'input window, operand 1']
    #allocation7 [shape = 's32[2]{0}', space=sflag, size = 0x8, scoped, tag = 'scoped memory for tpu_custom_call.1']
    #allocation8 [shape = 'u8[8192]{0}', space=vmem, size = 0x2000, scoped, tag = 'input window, operand 2']
    #allocation9 [shape = 'u8[32768]{0}', space=vmem, size = 0x8000, scoped, tag = 'input window, operand 3, single buffered']
    #allocation10 [shape = 's32[1]{0}', space=sflag, size = 0x4, scoped, tag = 'scoped memory for tpu_custom_call.1']
    #allocation11 [shape = 'u8[294912]{0}', space=vmem, size = 0x48000, scoped, tag = 'input window, operand 6, single buffered']
    #allocation12 [shape = 'u8[32768]{0}', space=vmem, size = 0x8000, scoped, tag = 'input window, operand 9, single buffered']
    #allocation13 [shape = 's32[1]{0}', space=sflag, size = 0x4, scoped, tag = 'scoped memory for tpu_custom_call.1']
    #allocation14 [shape = 'u8[32768]{0}', space=vmem, size = 0x8000, scoped, tag = 'input window, operand 12, single buffered']
    #allocation15 [shape = 'u8[32768]{0}', space=vmem, size = 0x8000, scoped, tag = 'output window, operand 0']
    %20 = vsyncpa [#allocation4], 0
    %s21 = scalar_lea.sflag [#allocation4], 1
    %22 = vsyncpa %s21, 0
    %23 = vsyncpa [#allocation7], 0
    %s24 = scalar_lea.sflag [#allocation7], 1
    %25 = vsyncpa %s24, 0
    %26 = vsyncpa [#allocation10], 0
    %27 = vsyncpa [#allocation13], 0
    %28 = vsyncpa [#allocation5], 0
    %s29 = scalar_lea.sflag [#allocation5], 1
    %30 = vsyncpa %s29, 0
    loop: start=0, step=1, limit=6
    $region2: #{tpu_custom_call.1} parent=1 // loop_pre_header
      _
    $region3: #{tpu_custom_call.1} parent=1 // loop_header
      %s32 = sphi 0, %s36
      %p33 = scmp.ge.s32.totalorder %s32, 6
      %s39 = sphi 0, %s51
      %s40 = sphi 0, %s47
      %s41 = sphi 0, %s39
      %s42 = sphi 0, %s40
      %s43 = sphi 0, %s41
      %s44 = sphi 0, %s42
      %s56 = sphi 0, %s58
      %s59 = sphi 0, %s56
      %s60 = sphi 0, %s59
      %s76 = sphi 0, %s60
      %s92 = sphi 0, %s94
      %s95 = sphi 0, %s92
      %s96 = sphi 0, %s95
      %s112 = sphi 0, %s96
      %s128 = sphi 0, %s130
      %s131 = sphi 0, %s128
      %s132 = sphi 0, %s131
      %s148 = sphi 0, %s132
      %s152 = sphi 0, %s152
      %s154 = sphi 0, %s152
      %s155 = sphi 0, %s154
      %s169 = sphi 0, %s155
      %s173 = sphi 0, %s173
      %s175 = sphi 0, %s173
      %s176 = sphi 0, %s175
      %s190 = sphi 0, %s176
      %s194 = sphi 0, %s194
      %s196 = sphi 0, %s194
      %s197 = sphi 0, %s196
      %s211 = sphi 0, %s197
      %s215 = sphi 0, %s215
      %s217 = sphi 0, %s215
      %s218 = sphi 0, %s217
      %s232 = sphi 0, %s218
      %s236 = sphi 0, %s236
      %s238 = sphi 0, %s236
      %s239 = sphi 0, %s238
      %s253 = sphi 0, %s239
      %s257 = sphi 0, %s257
      %s259 = sphi 0, %s257
      %s260 = sphi 0, %s259
      %s274 = sphi 0, %s260
      %s278 = sphi 0, %s278
      %s280 = sphi 0, %s278
      %s281 = sphi 0, %s280
      %s295 = sphi 0, %s281
      %s299 = sphi 0, %s299
      %s301 = sphi 0, %s299
      %s302 = sphi 0, %s301
      %s316 = sphi 0, %s302
      %s320 = sphi 0, %s320
      %s322 = sphi 0, %s320
      %s323 = sphi 0, %s322
      %s337 = sphi 0, %s323
      %s341 = sphi 0, %s341
      %s343 = sphi 0, %s341
      %s344 = sphi 0, %s343
      %s358 = sphi 0, %s344
      %s362 = sphi 0, %s362
      %s364 = sphi 0, %s362
      %s365 = sphi 0, %s364
      %s379 = sphi 0, %s365
      %s383 = sphi 0, %s383
      %s385 = sphi 0, %s383
      %s386 = sphi 0, %s385
      %s400 = sphi 0, %s386
      %s408 = sphi 0, %s410
      %s411 = sphi 0, %s408
      %s412 = sphi 0, %s411
      %s428 = sphi 0, %s412
    $region4: #{tpu_custom_call.1} parent=1 // loop_header_branch
      %35 = sbr.rel (%p33) target = $region8
    $region5: #{tpu_custom_call.1} parent=1 // loop_body
      %s37 = ssub.s32 %s32, 1
      %s38 = ssub.s32 %s32, 2
      %s45 = sadd.s32 1, %s40
      %p46 = scmp.ge.s32.totalorder %s45, 2
      %s47 = scalar_select %p46, 0, %s45
      %s48 = sadd.s32 1, %s39
      %s49 = scalar_select %p46, %s48, %s39
      %p50 = scmp.ge.s32.totalorder %s49, 2
      %s51 = scalar_select %p50, 0, %s49
      %s52 = ssub.s32 %s39, %s51
      %s53 = ssub.s32 %s40, %s47
      %s54 = sor.u32 %s52, %s53
      %p55 = scmp.eq.s32.totalorder %s54, 0
      %s57 = sadd.s32 %s56, 1
      %s58 = scalar_select %p55, %s56, %s57
      %p61 = pneg %p55
      %p62 = scmp.eq.s32.totalorder %s32, 3
      %p63 = por %p61, %p62
      %p64 = scmp.ne.s32.totalorder %s56, %s59
      %p65 = scmp.eq.s32.totalorder %s32, 0
      %p66 = por %p64, %p65
      %p67 = scmp.ne.s32.totalorder %s56, %s59
      %p68 = scmp.eq.s32.totalorder %s37, 3
      %p69 = por %p67, %p68
      %p70 = scmp.ne.s32.totalorder %s59, %s60
      %p71 = scmp.eq.s32.totalorder %s37, 0
      %p72 = por %p70, %p71
      %p73 = scmp.ne.s32.totalorder %s59, %s60
      %p74 = scmp.eq.s32.totalorder %s38, 3
      %p75 = por %p73, %p74
      %p77 = scmp.ne.s32.totalorder %s60, %s76
      %p78 = scmp.eq.s32.totalorder %s38, 0
      %p79 = por %p77, %p78
      %s80 = smul.u32 %s40, 4
      %s81 = ssub.s32 %s80, 1
      %p82 = scmp.gt.s32.totalorder %s81, 0
      %s83 = scalar_select %p82, %s81, 0
      %s84 = smul.u32 %s47, 4
      %s85 = ssub.s32 %s84, 1
      %p86 = scmp.gt.s32.totalorder %s85, 0
      %s87 = scalar_select %p86, %s85, 0
      %s88 = ssub.s32 %s39, %s51
      %s89 = ssub.s32 %s83, %s87
      %s90 = sor.u32 %s88, %s89
      %p91 = scmp.eq.s32.totalorder %s90, 0
      %s93 = sadd.s32 %s92, 1
      %s94 = scalar_select %p91, %s92, %s93
      %p97 = pneg %p91
      %p98 = scmp.eq.s32.totalorder %s32, 3
      %p99 = por %p97, %p98
      %p100 = scmp.ne.s32.totalorder %s92, %s95
      %p101 = scmp.eq.s32.totalorder %s32, 0
      %p102 = por %p100, %p101
      %p103 = scmp.ne.s32.totalorder %s92, %s95
      %p104 = scmp.eq.s32.totalorder %s37, 3
      %p105 = por %p103, %p104
      %p106 = scmp.ne.s32.totalorder %s95, %s96
      %p107 = scmp.eq.s32.totalorder %s37, 0
      %p108 = por %p106, %p107
      %p109 = scmp.ne.s32.totalorder %s95, %s96
      %p110 = scmp.eq.s32.totalorder %s38, 3
      %p111 = por %p109, %p110
      %p113 = scmp.ne.s32.totalorder %s96, %s112
      %p114 = scmp.eq.s32.totalorder %s38, 0
      %p115 = por %p113, %p114
      %s116 = smul.u32 %s40, 4
      %s117 = sadd.s32 %s116, 4
      %p118 = scmp.lt.s32.totalorder %s117, 7
      %s119 = scalar_select %p118, %s117, 7
      %s120 = smul.u32 %s47, 4
      %s121 = sadd.s32 %s120, 4
      %p122 = scmp.lt.s32.totalorder %s121, 7
      %s123 = scalar_select %p122, %s121, 7
      %s124 = ssub.s32 %s39, %s51
      %s125 = ssub.s32 %s119, %s123
      %s126 = sor.u32 %s124, %s125
      %p127 = scmp.eq.s32.totalorder %s126, 0
      %s129 = sadd.s32 %s128, 1
      %s130 = scalar_select %p127, %s128, %s129
      %p133 = pneg %p127
      %p134 = scmp.eq.s32.totalorder %s32, 3
      %p135 = por %p133, %p134
      %p136 = scmp.ne.s32.totalorder %s128, %s131
      %p137 = scmp.eq.s32.totalorder %s32, 0
      %p138 = por %p136, %p137
      %p139 = scmp.ne.s32.totalorder %s128, %s131
      %p140 = scmp.eq.s32.totalorder %s37, 3
      %p141 = por %p139, %p140
      %p142 = scmp.ne.s32.totalorder %s131, %s132
      %p143 = scmp.eq.s32.totalorder %s37, 0
      %p144 = por %p142, %p143
      %p145 = scmp.ne.s32.totalorder %s131, %s132
      %p146 = scmp.eq.s32.totalorder %s38, 3
      %p147 = por %p145, %p146
      %p149 = scmp.ne.s32.totalorder %s132, %s148
      %p150 = scmp.eq.s32.totalorder %s38, 0
      %p151 = por %p149, %p150
      %s153 = sadd.s32 %s152, 1
      %p156 = scmp.eq.s32.totalorder %s32, 3
      %p157 = scmp.ne.s32.totalorder %s152, %s154
      %p158 = scmp.eq.s32.totalorder %s32, 0
      %p159 = por %p157, %p158
      %p160 = scmp.ne.s32.totalorder %s152, %s154
      %p161 = scmp.eq.s32.totalorder %s37, 3
      %p162 = por %p160, %p161
      %p163 = scmp.ne.s32.totalorder %s154, %s155
      %p164 = scmp.eq.s32.totalorder %s37, 0
      %p165 = por %p163, %p164
      %p166 = scmp.ne.s32.totalorder %s154, %s155
      %p167 = scmp.eq.s32.totalorder %s38, 3
      %p168 = por %p166, %p167
      %p170 = scmp.ne.s32.totalorder %s155, %s169
      %p171 = scmp.eq.s32.totalorder %s38, 0
      %p172 = por %p170, %p171
      %s174 = sadd.s32 %s173, 1
      %p177 = scmp.eq.s32.totalorder %s32, 3
      %p178 = scmp.ne.s32.totalorder %s173, %s175
      %p179 = scmp.eq.s32.totalorder %s32, 0
      %p180 = por %p178, %p179
      %p181 = scmp.ne.s32.totalorder %s173, %s175
      %p182 = scmp.eq.s32.totalorder %s37, 3
      %p183 = por %p181, %p182
      %p184 = scmp.ne.s32.totalorder %s175, %s176
      %p185 = scmp.eq.s32.totalorder %s37, 0
      %p186 = por %p184, %p185
      %p187 = scmp.ne.s32.totalorder %s175, %s176
      %p188 = scmp.eq.s32.totalorder %s38, 3
      %p189 = por %p187, %p188
      %p191 = scmp.ne.s32.totalorder %s176, %s190
      %p192 = scmp.eq.s32.totalorder %s38, 0
      %p193 = por %p191, %p192
      %s195 = sadd.s32 %s194, 1
      %p198 = scmp.eq.s32.totalorder %s32, 3
      %p199 = scmp.ne.s32.totalorder %s194, %s196
      %p200 = scmp.eq.s32.totalorder %s32, 0
      %p201 = por %p199, %p200
      %p202 = scmp.ne.s32.totalorder %s194, %s196
      %p203 = scmp.eq.s32.totalorder %s37, 3
      %p204 = por %p202, %p203
      %p205 = scmp.ne.s32.totalorder %s196, %s197
      %p206 = scmp.eq.s32.totalorder %s37, 0
      %p207 = por %p205, %p206
      %p208 = scmp.ne.s32.totalorder %s196, %s197
      %p209 = scmp.eq.s32.totalorder %s38, 3
      %p210 = por %p208, %p209
      %p212 = scmp.ne.s32.totalorder %s197, %s211
      %p213 = scmp.eq.s32.totalorder %s38, 0
      %p214 = por %p212, %p213
      %s216 = sadd.s32 %s215, 1
      %p219 = scmp.eq.s32.totalorder %s32, 3
      %p220 = scmp.ne.s32.totalorder %s215, %s217
      %p221 = scmp.eq.s32.totalorder %s32, 0
      %p222 = por %p220, %p221
      %p223 = scmp.ne.s32.totalorder %s215, %s217
      %p224 = scmp.eq.s32.totalorder %s37, 3
      %p225 = por %p223, %p224
      %p226 = scmp.ne.s32.totalorder %s217, %s218
      %p227 = scmp.eq.s32.totalorder %s37, 0
      %p228 = por %p226, %p227
      %p229 = scmp.ne.s32.totalorder %s217, %s218
      %p230 = scmp.eq.s32.totalorder %s38, 3
      %p231 = por %p229, %p230
      %p233 = scmp.ne.s32.totalorder %s218, %s232
      %p234 = scmp.eq.s32.totalorder %s38, 0
      %p235 = por %p233, %p234
      %s237 = sadd.s32 %s236, 1
      %p240 = scmp.eq.s32.totalorder %s32, 3
      %p241 = scmp.ne.s32.totalorder %s236, %s238
      %p242 = scmp.eq.s32.totalorder %s32, 0
      %p243 = por %p241, %p242
      %p244 = scmp.ne.s32.totalorder %s236, %s238
      %p245 = scmp.eq.s32.totalorder %s37, 3
      %p246 = por %p244, %p245
      %p247 = scmp.ne.s32.totalorder %s238, %s239
      %p248 = scmp.eq.s32.totalorder %s37, 0
      %p249 = por %p247, %p248
      %p250 = scmp.ne.s32.totalorder %s238, %s239
      %p251 = scmp.eq.s32.totalorder %s38, 3
      %p252 = por %p250, %p251
      %p254 = scmp.ne.s32.totalorder %s239, %s253
      %p255 = scmp.eq.s32.totalorder %s38, 0
      %p256 = por %p254, %p255
      %s258 = sadd.s32 %s257, 1
      %p261 = scmp.eq.s32.totalorder %s32, 3
      %p262 = scmp.ne.s32.totalorder %s257, %s259
      %p263 = scmp.eq.s32.totalorder %s32, 0
      %p264 = por %p262, %p263
      %p265 = scmp.ne.s32.totalorder %s257, %s259
      %p266 = scmp.eq.s32.totalorder %s37, 3
      %p267 = por %p265, %p266
      %p268 = scmp.ne.s32.totalorder %s259, %s260
      %p269 = scmp.eq.s32.totalorder %s37, 0
      %p270 = por %p268, %p269
      %p271 = scmp.ne.s32.totalorder %s259, %s260
      %p272 = scmp.eq.s32.totalorder %s38, 3
      %p273 = por %p271, %p272
      %p275 = scmp.ne.s32.totalorder %s260, %s274
      %p276 = scmp.eq.s32.totalorder %s38, 0
      %p277 = por %p275, %p276
      %s279 = sadd.s32 %s278, 1
      %p282 = scmp.eq.s32.totalorder %s32, 3
      %p283 = scmp.ne.s32.totalorder %s278, %s280
      %p284 = scmp.eq.s32.totalorder %s32, 0
      %p285 = por %p283, %p284
      %p286 = scmp.ne.s32.totalorder %s278, %s280
      %p287 = scmp.eq.s32.totalorder %s37, 3
      %p288 = por %p286, %p287
      %p289 = scmp.ne.s32.totalorder %s280, %s281
      %p290 = scmp.eq.s32.totalorder %s37, 0
      %p291 = por %p289, %p290
      %p292 = scmp.ne.s32.totalorder %s280, %s281
      %p293 = scmp.eq.s32.totalorder %s38, 3
      %p294 = por %p292, %p293
      %p296 = scmp.ne.s32.totalorder %s281, %s295
      %p297 = scmp.eq.s32.totalorder %s38, 0
      %p298 = por %p296, %p297
      %s300 = sadd.s32 %s299, 1
      %p303 = scmp.eq.s32.totalorder %s32, 3
      %p304 = scmp.ne.s32.totalorder %s299, %s301
      %p305 = scmp.eq.s32.totalorder %s32, 0
      %p306 = por %p304, %p305
      %p307 = scmp.ne.s32.totalorder %s299, %s301
      %p308 = scmp.eq.s32.totalorder %s37, 3
      %p309 = por %p307, %p308
      %p310 = scmp.ne.s32.totalorder %s301, %s302
      %p311 = scmp.eq.s32.totalorder %s37, 0
      %p312 = por %p310, %p311
      %p313 = scmp.ne.s32.totalorder %s301, %s302
      %p314 = scmp.eq.s32.totalorder %s38, 3
      %p315 = por %p313, %p314
      %p317 = scmp.ne.s32.totalorder %s302, %s316
      %p318 = scmp.eq.s32.totalorder %s38, 0
      %p319 = por %p317, %p318
      %s321 = sadd.s32 %s320, 1
      %p324 = scmp.eq.s32.totalorder %s32, 3
      %p325 = scmp.ne.s32.totalorder %s320, %s322
      %p326 = scmp.eq.s32.totalorder %s32, 0
      %p327 = por %p325, %p326
      %p328 = scmp.ne.s32.totalorder %s320, %s322
      %p329 = scmp.eq.s32.totalorder %s37, 3
      %p330 = por %p328, %p329
      %p331 = scmp.ne.s32.totalorder %s322, %s323
      %p332 = scmp.eq.s32.totalorder %s37, 0
      %p333 = por %p331, %p332
      %p334 = scmp.ne.s32.totalorder %s322, %s323
      %p335 = scmp.eq.s32.totalorder %s38, 3
      %p336 = por %p334, %p335
      %p338 = scmp.ne.s32.totalorder %s323, %s337
      %p339 = scmp.eq.s32.totalorder %s38, 0
      %p340 = por %p338, %p339
      %s342 = sadd.s32 %s341, 1
      %p345 = scmp.eq.s32.totalorder %s32, 3
      %p346 = scmp.ne.s32.totalorder %s341, %s343
      %p347 = scmp.eq.s32.totalorder %s32, 0
      %p348 = por %p346, %p347
      %p349 = scmp.ne.s32.totalorder %s341, %s343
      %p350 = scmp.eq.s32.totalorder %s37, 3
      %p351 = por %p349, %p350
      %p352 = scmp.ne.s32.totalorder %s343, %s344
      %p353 = scmp.eq.s32.totalorder %s37, 0
      %p354 = por %p352, %p353
      %p355 = scmp.ne.s32.totalorder %s343, %s344
      %p356 = scmp.eq.s32.totalorder %s38, 3
      %p357 = por %p355, %p356
      %p359 = scmp.ne.s32.totalorder %s344, %s358
      %p360 = scmp.eq.s32.totalorder %s38, 0
      %p361 = por %p359, %p360
      %s363 = sadd.s32 %s362, 1
      %p366 = scmp.eq.s32.totalorder %s32, 3
      %p367 = scmp.ne.s32.totalorder %s362, %s364
      %p368 = scmp.eq.s32.totalorder %s32, 0
      %p369 = por %p367, %p368
      %p370 = scmp.ne.s32.totalorder %s362, %s364
      %p371 = scmp.eq.s32.totalorder %s37, 3
      %p372 = por %p370, %p371
      %p373 = scmp.ne.s32.totalorder %s364, %s365
      %p374 = scmp.eq.s32.totalorder %s37, 0
      %p375 = por %p373, %p374
      %p376 = scmp.ne.s32.totalorder %s364, %s365
      %p377 = scmp.eq.s32.totalorder %s38, 3
      %p378 = por %p376, %p377
      %p380 = scmp.ne.s32.totalorder %s365, %s379
      %p381 = scmp.eq.s32.totalorder %s38, 0
      %p382 = por %p380, %p381
      %s384 = sadd.s32 %s383, 1
      %p387 = scmp.eq.s32.totalorder %s32, 3
      %p388 = scmp.ne.s32.totalorder %s383, %s385
      %p389 = scmp.eq.s32.totalorder %s32, 0
      %p390 = por %p388, %p389
      %p391 = scmp.ne.s32.totalorder %s383, %s385
      %p392 = scmp.eq.s32.totalorder %s37, 3
      %p393 = por %p391, %p392
      %p394 = scmp.ne.s32.totalorder %s385, %s386
      %p395 = scmp.eq.s32.totalorder %s37, 0
      %p396 = por %p394, %p395
      %p397 = scmp.ne.s32.totalorder %s385, %s386
      %p398 = scmp.eq.s32.totalorder %s38, 3
      %p399 = por %p397, %p398
      %p401 = scmp.ne.s32.totalorder %s386, %s400
      %p402 = scmp.eq.s32.totalorder %s38, 0
      %p403 = por %p401, %p402
      %s404 = ssub.s32 %s39, %s51
      %s405 = ssub.s32 %s40, %s47
      %s406 = sor.u32 %s404, %s405
      %p407 = scmp.eq.s32.totalorder %s406, 0
      %s409 = sadd.s32 %s408, 1
      %s410 = scalar_select %p407, %s408, %s409
      %p413 = pneg %p407
      %p414 = scmp.eq.s32.totalorder %s32, 3
      %p415 = por %p413, %p414
      %p416 = scmp.ne.s32.totalorder %s408, %s411
      %p417 = scmp.eq.s32.totalorder %s32, 0
      %p418 = por %p416, %p417
      %p419 = scmp.ne.s32.totalorder %s408, %s411
      %p420 = scmp.eq.s32.totalorder %s37, 3
      %p421 = por %p419, %p420
      %p422 = scmp.ne.s32.totalorder %s411, %s412
      %p423 = scmp.eq.s32.totalorder %s37, 0
      %p424 = por %p422, %p423
      %p425 = scmp.ne.s32.totalorder %s411, %s412
      %p426 = scmp.eq.s32.totalorder %s38, 3
      %p427 = por %p425, %p426
      %p429 = scmp.ne.s32.totalorder %s412, %s428
      %p430 = scmp.eq.s32.totalorder %s38, 0
      %p431 = por %p429, %p430
      %p432 = scmp.le.s32.totalorder 1, %s32
      %p433 = scmp.lt.s32.totalorder %s32, 5
      %p434 = pnand %p432, %p433
      %p435 = pneg %p434
      // Predicated region
      $region9: #{tpu_custom_call.1} parent=5 // pred_check
        _
      $region10: #{tpu_custom_call.1} parent=5 // pred_check_branch
        %437 = sbr.rel (%p434) target = $region12
      $region11: #{tpu_custom_call.1} parent=5 // pred_region
        %s438 = ssub.s32 %s32, 1
        // Predicated region
        $region13: #{tpu_custom_call.1} parent=11 // pred_check
          %p439 = pneg %p165
        $region14: #{tpu_custom_call.1} parent=11 // pred_check_branch
          %441 = sbr.rel (%p439) target = $region16
        $region15: #{tpu_custom_call.1} parent=11 // pred_region
          %s443 = ssub.s32 1024, 1024
          %444 = vsyncadd [#allocation10], %s443
          %s445 = sshll.u32 [#allocation9], 4
          %s446 = int_to_ptr.vmem [resolvable:$true] %s445
          %451 = dma.hbm_to_vmem [thread:$0]  %s3, 1024, %s446, [#allocation10], 64, 64, 4
        $region16: #{tpu_custom_call.1} parent=11 // pred_fallthru
          _
        // Predicated region
        $region17: #{tpu_custom_call.1} parent=11 // pred_check
          %p452 = pneg %p186
        $region18: #{tpu_custom_call.1} parent=11 // pred_check_branch
          %454 = sbr.rel (%p452) target = $region20
        $region19: #{tpu_custom_call.1} parent=11 // pred_region
          _
        $region20: #{tpu_custom_call.1} parent=11 // pred_fallthru
          _
        // Predicated region
        $region21: #{tpu_custom_call.1} parent=11 // pred_check
          %p455 = pneg %p207
        $region22: #{tpu_custom_call.1} parent=11 // pred_check_branch
          %457 = sbr.rel (%p455) target = $region24
        $region23: #{tpu_custom_call.1} parent=11 // pred_region
          _
        $region24: #{tpu_custom_call.1} parent=11 // pred_fallthru
          _
        // Predicated region
        $region25: #{tpu_custom_call.1} parent=11 // pred_check
          %p458 = pneg %p228
        $region26: #{tpu_custom_call.1} parent=11 // pred_check_branch
          %460 = sbr.rel (%p458) target = $region28
        $region27: #{tpu_custom_call.1} parent=11 // pred_region
          %s462 = ssub.s32 9216, 9216
          %463 = vsyncadd [#allocation10], %s462
          %s464 = sshll.u32 [#allocation11], 4
          %s465 = int_to_ptr.vmem [resolvable:$true] %s464
          %470 = dma.hbm_to_vmem [thread:$0]  %s6, 9216, %s465, [#allocation10], 64, 64, 4
        $region28: #{tpu_custom_call.1} parent=11 // pred_fallthru
          _
        // Predicated region
        $region29: #{tpu_custom_call.1} parent=11 // pred_check
          %p471 = pneg %p249
        $region30: #{tpu_custom_call.1} parent=11 // pred_check_branch
          %473 = sbr.rel (%p471) target = $region32
        $region31: #{tpu_custom_call.1} parent=11 // pred_region
          _
        $region32: #{tpu_custom_call.1} parent=11 // pred_fallthru
          _
        // Predicated region
        $region33: #{tpu_custom_call.1} parent=11 // pred_check
          %p474 = pneg %p270
        $region34: #{tpu_custom_call.1} parent=11 // pred_check_branch
          %476 = sbr.rel (%p474) target = $region36
        $region35: #{tpu_custom_call.1} parent=11 // pred_region
          _
        $region36: #{tpu_custom_call.1} parent=11 // pred_fallthru
          _
        // Predicated region
        $region37: #{tpu_custom_call.1} parent=11 // pred_check
          %p477 = pneg %p291
        $region38: #{tpu_custom_call.1} parent=11 // pred_check_branch
          %479 = sbr.rel (%p477) target = $region40
        $region39: #{tpu_custom_call.1} parent=11 // pred_region
          %s481 = ssub.s32 1024, 1024
          %482 = vsyncadd [#allocation13], %s481
          %s483 = sshll.u32 [#allocation12], 4
          %s484 = int_to_ptr.vmem [resolvable:$true] %s483
          %489 = dma.hbm_to_vmem [thread:$0]  %s9, 1024, %s484, [#allocation13], 64, 64, 4
        $region40: #{tpu_custom_call.1} parent=11 // pred_fallthru
          _
        // Predicated region
        $region41: #{tpu_custom_call.1} parent=11 // pred_check
          %p490 = pneg %p312
        $region42: #{tpu_custom_call.1} parent=11 // pred_check_branch
          %492 = sbr.rel (%p490) target = $region44
        $region43: #{tpu_custom_call.1} parent=11 // pred_region
          _
        $region44: #{tpu_custom_call.1} parent=11 // pred_fallthru
          _
        // Predicated region
        $region45: #{tpu_custom_call.1} parent=11 // pred_check
          %p493 = pneg %p333
        $region46: #{tpu_custom_call.1} parent=11 // pred_check_branch
          %495 = sbr.rel (%p493) target = $region48
        $region47: #{tpu_custom_call.1} parent=11 // pred_region
          _
        $region48: #{tpu_custom_call.1} parent=11 // pred_fallthru
          _
        // Predicated region
        $region49: #{tpu_custom_call.1} parent=11 // pred_check
          %p496 = pneg %p354
        $region50: #{tpu_custom_call.1} parent=11 // pred_check_branch
          %498 = sbr.rel (%p496) target = $region52
        $region51: #{tpu_custom_call.1} parent=11 // pred_region
          %s500 = ssub.s32 1024, 1024
          %501 = vsyncadd [#allocation13], %s500
          %s502 = sshll.u32 [#allocation14], 4
          %s503 = int_to_ptr.vmem [resolvable:$true] %s502
          %508 = dma.hbm_to_vmem [thread:$0]  %s12, 1024, %s503, [#allocation13], 64, 64, 4
        $region52: #{tpu_custom_call.1} parent=11 // pred_fallthru
          _
        // Predicated region
        $region53: #{tpu_custom_call.1} parent=11 // pred_check
          %p509 = pneg %p375
        $region54: #{tpu_custom_call.1} parent=11 // pred_check_branch
          %511 = sbr.rel (%p509) target = $region56
        $region55: #{tpu_custom_call.1} parent=11 // pred_region
          _
        $region56: #{tpu_custom_call.1} parent=11 // pred_fallthru
          _
        // Predicated region
        $region57: #{tpu_custom_call.1} parent=11 // pred_check
          %p512 = pneg %p396
        $region58: #{tpu_custom_call.1} parent=11 // pred_check_branch
          %514 = sbr.rel (%p512) target = $region60
        $region59: #{tpu_custom_call.1} parent=11 // pred_region
          _
        $region60: #{tpu_custom_call.1} parent=11 // pred_fallthru
          _
      $region12: #{tpu_custom_call.1} parent=5 // pred_fallthru
        _
      %p515 = scmp.lt.s32.totalorder %s32, 4
      // Predicated region
      $region61: #{tpu_custom_call.1} parent=5 // pred_check
        %p516 = pneg %p515
      $region62: #{tpu_custom_call.1} parent=5 // pred_check_branch
        %518 = sbr.rel (%p516) target = $region64
      $region63: #{tpu_custom_call.1} parent=5 // pred_region
        // Predicated region
        $region65: #{tpu_custom_call.1} parent=63 // pred_check
          %p519 = pneg %p66
        $region66: #{tpu_custom_call.1} parent=63 // pred_check_branch
          %521 = sbr.rel (%p519) target = $region68
        $region67: #{tpu_custom_call.1} parent=63 // pred_region
          %s522 = sand.u32 %s56, 1
          %s523 = scalar_lea.sflag [#allocation4], %s522
          %s524 = sand.u32 %s56, 1
          %s525 = smul.addr %s524, 32
          %s526 = scalar_lea.vmem [#allocation3], %s525
          %s527 = smul.u32 4, %s40
          %s529 = ssub.s32 512, 512
          %530 = vsyncadd %s523, %s529
          %s531 = smul.addr %s39, 8
          %s532 = sadd.s32 %s527, %s531
          %s533 = smul.addr %s532, 128
          %s534 = scalar_lea.hbm %s0, %s533
          %s535 = sshll.u32 %s526, 4
          %s536 = int_to_ptr.vmem [resolvable:$true] %s535
          %541 = dma.hbm_to_vmem [thread:$0]  %s534, 512, %s536, %s523, 128, 128, 8
        $region68: #{tpu_custom_call.1} parent=63 // pred_fallthru
          _
        // Predicated region
        $region69: #{tpu_custom_call.1} parent=63 // pred_check
          %p542 = pneg %p102
        $region70: #{tpu_custom_call.1} parent=63 // pred_check_branch
          %544 = sbr.rel (%p542) target = $region72
        $region71: #{tpu_custom_call.1} parent=63 // pred_region
          %s545 = sand.u32 %s32, 1
          %s546 = scalar_lea.sflag [#allocation7], %s545
          %s547 = sand.u32 %s92, 1
          %s548 = smul.addr %s547, 8
          %s549 = scalar_lea.vmem [#allocation6], %s548
          %s550 = smul.u32 %s40, 4
          %s551 = ssub.s32 %s550, 1
          %p552 = scmp.gt.s32.totalorder %s551, 0
          %s553 = scalar_select %p552, %s551, 0
          %s555 = ssub.s32 128, 128
          %556 = vsyncadd %s546, %s555
          %s557 = smul.addr %s39, 8
          %s558 = sadd.s32 %s553, %s557
          %s559 = smul.addr %s558, 128
          %s560 = scalar_lea.hbm %s1, %s559
          %s562 = sshll.u32 %s549, 4
          %s563 = int_to_ptr.vmem [resolvable:$true] %s562
          %565 = dma.hbm_to_vmem [thread:$0]  %s560, 128, %s563, %s546
        $region72: #{tpu_custom_call.1} parent=63 // pred_fallthru
          _
        // Predicated region
        $region73: #{tpu_custom_call.1} parent=63 // pred_check
          %p566 = pneg %p138
        $region74: #{tpu_custom_call.1} parent=63 // pred_check_branch
          %568 = sbr.rel (%p566) target = $region76
        $region75: #{tpu_custom_call.1} parent=63 // pred_region
          %s569 = sand.u32 %s32, 1
          %s570 = scalar_lea.sflag [#allocation7], %s569
          %s571 = sand.u32 %s128, 1
          %s572 = smul.addr %s571, 8
          %s573 = scalar_lea.vmem [#allocation8], %s572
          %s574 = smul.u32 %s40, 4
          %s575 = sadd.s32 %s574, 4
          %p576 = scmp.lt.s32.totalorder %s575, 7
          %s577 = scalar_select %p576, %s575, 7
          %s579 = ssub.s32 128, 128
          %580 = vsyncadd %s570, %s579
          %s581 = smul.addr %s39, 8
          %s582 = sadd.s32 %s577, %s581
          %s583 = smul.addr %s582, 128
          %s584 = scalar_lea.hbm %s2, %s583
          %s586 = sshll.u32 %s573, 4
          %s587 = int_to_ptr.vmem [resolvable:$true] %s586
          %589 = dma.hbm_to_vmem [thread:$0]  %s584, 128, %s587, %s570
        $region76: #{tpu_custom_call.1} parent=63 // pred_fallthru
          _
      $region64: #{tpu_custom_call.1} parent=5 // pred_fallthru
        _
      %p590 = scmp.le.s32.totalorder 1, %s32
      %p591 = scmp.lt.s32.totalorder %s32, 5
      %p592 = pnand %p590, %p591
      %p593 = pneg %p592
      // Predicated region
      $region77: #{tpu_custom_call.1} parent=5 // pred_check
        _
      $region78: #{tpu_custom_call.1} parent=5 // pred_check_branch
        %595 = sbr.rel (%p592) target = $region80
      $region79: #{tpu_custom_call.1} parent=5 // pred_region
        %s596 = ssub.s32 %s32, 1
        %s597 = sand.u32 %s59, 1
        %s598 = scalar_lea.sflag [#allocation4], %s597
        %s599 = sand.u32 %s59, 1
        %s600 = smul.addr %s599, 32
        %s601 = scalar_lea.vmem [#allocation3], %s600
        // Predicated region
        $region81: #{tpu_custom_call.1} parent=79 // pred_check
          %p602 = pneg %p72
        $region82: #{tpu_custom_call.1} parent=79 // pred_check_branch
          %604 = sbr.rel (%p602) target = $region84
        $region83: #{tpu_custom_call.1} parent=79 // pred_region
          %605 = dma.done %s598, 512
        $region84: #{tpu_custom_call.1} parent=79 // pred_fallthru
          _
        %s606 = sand.u32 %s37, 1
        %s607 = scalar_lea.sflag [#allocation7], %s606
        %s608 = sand.u32 %s95, 1
        %s609 = smul.addr %s608, 8
        %s610 = scalar_lea.vmem [#allocation6], %s609
        // Predicated region
        $region85: #{tpu_custom_call.1} parent=79 // pred_check
          %p611 = pneg %p108
        $region86: #{tpu_custom_call.1} parent=79 // pred_check_branch
          %613 = sbr.rel (%p611) target = $region88
        $region87: #{tpu_custom_call.1} parent=79 // pred_region
          %614 = dma.done %s607, 128
        $region88: #{tpu_custom_call.1} parent=79 // pred_fallthru
          _
        %s615 = sand.u32 %s37, 1
        %s616 = scalar_lea.sflag [#allocation7], %s615
        %s617 = sand.u32 %s131, 1
        %s618 = smul.addr %s617, 8
        %s619 = scalar_lea.vmem [#allocation8], %s618
        // Predicated region
        $region89: #{tpu_custom_call.1} parent=79 // pred_check
          %p620 = pneg %p144
        $region90: #{tpu_custom_call.1} parent=79 // pred_check_branch
          %622 = sbr.rel (%p620) target = $region92
        $region91: #{tpu_custom_call.1} parent=79 // pred_region
          %623 = dma.done %s616, 128
        $region92: #{tpu_custom_call.1} parent=79 // pred_fallthru
          _
        // Predicated region
        $region93: #{tpu_custom_call.1} parent=79 // pred_check
          %p624 = pneg %p165
        $region94: #{tpu_custom_call.1} parent=79 // pred_check_branch
          %626 = sbr.rel (%p624) target = $region96
        $region95: #{tpu_custom_call.1} parent=79 // pred_region
          %627 = dma.done [#allocation10], 1024
        $region96: #{tpu_custom_call.1} parent=79 // pred_fallthru
          _
        // Predicated region
        $region97: #{tpu_custom_call.1} parent=79 // pred_check
          %p628 = pneg %p228
        $region98: #{tpu_custom_call.1} parent=79 // pred_check_branch
          %630 = sbr.rel (%p628) target = $region100
        $region99: #{tpu_custom_call.1} parent=79 // pred_region
          %631 = dma.done [#allocation10], 9216
        $region100: #{tpu_custom_call.1} parent=79 // pred_fallthru
          _
        // Predicated region
        $region101: #{tpu_custom_call.1} parent=79 // pred_check
          %p632 = pneg %p291
        $region102: #{tpu_custom_call.1} parent=79 // pred_check_branch
          %634 = sbr.rel (%p632) target = $region104
        $region103: #{tpu_custom_call.1} parent=79 // pred_region
          %635 = dma.done [#allocation13], 1024
        $region104: #{tpu_custom_call.1} parent=79 // pred_fallthru
          _
        // Predicated region
        $region105: #{tpu_custom_call.1} parent=79 // pred_check
          %p636 = pneg %p354
        $region106: #{tpu_custom_call.1} parent=79 // pred_check_branch
          %638 = sbr.rel (%p636) target = $region108
        $region107: #{tpu_custom_call.1} parent=79 // pred_region
          %639 = dma.done [#allocation13], 1024
        $region108: #{tpu_custom_call.1} parent=79 // pred_fallthru
          _
        %s640 = sand.u32 %s59, 1
        %s641 = scalar_lea.sflag [#allocation4], %s640
        %s642 = sand.u32 %s59, 1
        %s643 = smul.addr %s642, 32
        %s644 = scalar_lea.vmem [#allocation3], %s643
        %p645 = pneg %p72
        %p646 = pneg %p69
        %s647 = sand.u32 %s37, 1
        %s648 = scalar_lea.sflag [#allocation7], %s647
        %s649 = sand.u32 %s95, 1
        %s650 = smul.addr %s649, 8
        %s651 = scalar_lea.vmem [#allocation6], %s650
        %p652 = pneg %p108
        %p653 = pneg %p105
        %s654 = sand.u32 %s37, 1
        %s655 = scalar_lea.sflag [#allocation7], %s654
        %s656 = sand.u32 %s131, 1
        %s657 = smul.addr %s656, 8
        %s658 = scalar_lea.vmem [#allocation8], %s657
        %p659 = pneg %p144
        %p660 = pneg %p141
        %p661 = pneg %p165
        %p662 = pneg %p162
        %p663 = pneg %p186
        %p664 = pneg %p183
        %p665 = pneg %p207
        %p666 = pneg %p204
        %p667 = pneg %p228
        %p668 = pneg %p225
        %p669 = pneg %p249
        %p670 = pneg %p246
        %p671 = pneg %p270
        %p672 = pneg %p267
        %p673 = pneg %p291
        %p674 = pneg %p288
        %p675 = pneg %p312
        %p676 = pneg %p309
        %p677 = pneg %p333
        %p678 = pneg %p330
        %p679 = pneg %p354
        %p680 = pneg %p351
        %p681 = pneg %p375
        %p682 = pneg %p372
        %p683 = pneg %p396
        %p684 = pneg %p393
        %p685 = pneg %p424
        %p686 = pneg %p421
        %s687 = sand.u32 %s411, 1
        %s688 = scalar_lea.sflag [#allocation5], %s687
        %s689 = sand.u32 %s411, 1
        %s690 = smul.addr %s689, 32
        %s691 = scalar_lea.vmem [#allocation15], %s690
        %s692 = smul.u32 4, %s42
        %s693 = smul.u32 %s42, 4
        %s694 = ssub.s32 %s693, 1
        %p695 = scmp.gt.s32.totalorder %s694, 0
        %s696 = scalar_select %p695, %s694, 0
        %s697 = smul.u32 %s42, 4
        %s698 = sadd.s32 %s697, 4
        %p699 = scmp.lt.s32.totalorder %s698, 7
        %s700 = scalar_select %p699, %s698, 7
        %s701 = smul.u32 4, %s42
        %v703 = vld [vmem:[%s601] sm:$0xff]
        %v704 = vld [vmem:[%s601 + $0x8] sm:$0xff]
        %v705 = vld [vmem:[%s601 + $0x10] sm:$0xff]
        %v706 = vld [vmem:[%s601 + $0x18] sm:$0xff]
        %v707 = vld [vmem:[%s610] sm:$0xff]
        %v708 = vld [vmem:[%s619] sm:$0xff]
        %v709 = vpack.c.bf16 %v703, %v707
        %v710 = vpack.c.bf16 %v705, %v704
        %v711 = vpack.c.bf16 %v708, %v706
        %v712 = vld [vmem:[#allocation9] sm:$0xf]
        %v713 = vld [vmem:[#allocation9 + $0x4] sm:$0xf]
        %v714 = vld [vmem:[#allocation9 + $0x8] sm:$0xf]
        %v715 = vld [vmem:[#allocation9 + $0xc] sm:$0xf]
        %v716 = vld [vmem:[#allocation9 + $0x10] sm:$0xf]
        %v717 = vld [vmem:[#allocation9 + $0x14] sm:$0xf]
        %v718 = vld [vmem:[#allocation9 + $0x18] sm:$0xf]
        %v719 = vld [vmem:[#allocation9 + $0x1c] sm:$0xf]
        %v720 = vld [vmem:[#allocation9 + $0x20] sm:$0xf]
        %v721 = vld [vmem:[#allocation9 + $0x24] sm:$0xf]
        %v722 = vld [vmem:[#allocation9 + $0x28] sm:$0xf]
        %v723 = vld [vmem:[#allocation9 + $0x2c] sm:$0xf]
        %v724 = vld [vmem:[#allocation9 + $0x30] sm:$0xf]
        %v725 = vld [vmem:[#allocation9 + $0x34] sm:$0xf]
        %v726 = vld [vmem:[#allocation9 + $0x38] sm:$0xf]
        %v727 = vld [vmem:[#allocation9 + $0x3c] sm:$0xf]
        %v744 = vunpack.c.l.b16 %v712
        %v745 = vunpack.c.l.b16 %v713
        %v746 = vunpack.c.l.b16 %v714
        %v747 = vunpack.c.l.b16 %v715
        %v748 = vunpack.c.l.b16 %v716
        %v749 = vunpack.c.l.b16 %v717
        %v750 = vunpack.c.l.b16 %v718
        %v751 = vunpack.c.l.b16 %v719
        %v752 = vunpack.c.l.b16 %v720
        %v753 = vunpack.c.l.b16 %v721
        %v754 = vunpack.c.l.b16 %v722
        %v755 = vunpack.c.l.b16 %v723
        %v756 = vunpack.c.l.b16 %v724
        %v757 = vunpack.c.l.b16 %v725
        %v758 = vunpack.c.l.b16 %v726
        %v759 = vunpack.c.l.b16 %v727
        %v760 = vpack.c.b16 %v745, %v744
        %v761 = vpack.c.b16 %v747, %v746
        %v762 = vpack.c.b16 %v749, %v748
        %v763 = vpack.c.b16 %v751, %v750
        %v764 = vpack.c.b16 %v753, %v752
        %v765 = vpack.c.b16 %v755, %v754
        %v766 = vpack.c.b16 %v757, %v756
        %v767 = vpack.c.b16 %v759, %v758
        %776 = vmatprep.subr.bf16.mxu0 0
        %777 = vmatpush1.bf16.msra.mxu0 %v760
        %778 = vmatprep.subr.bf16.mxu0 0
        %779 = vmatpush1.bf16.msra.mxu0 %v761
        %780 = vmatprep.subr.bf16.mxu0 0
        %781 = vmatpush1.bf16.msra.mxu0 %v762
        %782 = vmatprep.subr.bf16.mxu0 0
        %783 = vmatpush1.bf16.msra.mxu0 %v763
        %784 = vmatprep.subr.bf16.mxu0 0
        %785 = vmatpush1.bf16.msra.mxu0 %v764
        %786 = vmatprep.subr.bf16.mxu0 0
        %787 = vmatpush1.bf16.msra.mxu0 %v765
        %788 = vmatprep.subr.bf16.mxu0 0
        %789 = vmatpush1.bf16.msra.mxu0 %v766
        %790 = vmatprep.subr.bf16.mxu0 0
        %791 = vmatpush1.bf16.msra.mxu0 %v767
        %792 = vmatprep.subr.bf16.mxu0 0
        %793 = vmatpush1.bf16.msra.mxu0 0
        %794 = vmatprep.subr.bf16.mxu0 0
        %795 = vmatpush1.bf16.msra.mxu0 0
        %796 = vmatprep.subr.bf16.mxu0 0
        %797 = vmatpush1.bf16.msra.mxu0 0
        %798 = vmatprep.subr.bf16.mxu0 0
        %799 = vmatpush1.bf16.msra.mxu0 0
        %800 = vmatprep.subr.bf16.mxu0 0
        %801 = vmatpush1.bf16.msra.mxu0 0
        %802 = vmatprep.subr.bf16.mxu0 0
        %803 = vmatpush1.bf16.msra.mxu0 0
        %804 = vmatprep.subr.bf16.mxu0 0
        %805 = vmatpush1.bf16.msra.mxu0 0
        %806 = vmatprep.subr.bf16.mxu0 0
        %807 = vmatpush1.bf16.msra.mxu0 0
        %808 = vmatprep.mubr.bf16.mxu0 0
        %809 = vmatmul.mubr.bf16.gmra.mrb[0].mxu0 %v709
        %v810 = vpop.f32.mrb[0].mxu0
        %v811 = vadd.f32 0.0, %v810
        %v812 = vpop.f32.mrb[0].mxu0
        %v813 = vpop.f32.mrb[0].mxu0
        %v814 = vadd.f32 0.0, %v813
        %v815 = vpop.f32.mrb[0].mxu0
        %816 = vmatprep.mubr.bf16.mxu0 0
        %817 = vmatmul.mubr.bf16.gmra.mrb[0].mxu0 %v710
        %v818 = vpop.f32.mrb[0].mxu0
        %v819 = vadd.f32 0.0, %v818
        %v820 = vpop.f32.mrb[0].mxu0
        %v821 = vpop.f32.mrb[0].mxu0
        %v822 = vadd.f32 0.0, %v821
        %v823 = vpop.f32.mrb[0].mxu0
        %824 = vmatprep.mubr.bf16.mxu0 0
        %825 = vmatmul.mubr.bf16.gmra.mrb[0].mxu0 %v711
        %v826 = vpop.f32.mrb[0].mxu0
        %v827 = vadd.f32 0.0, %v826
        %v828 = vpop.f32.mrb[0].mxu0
        %v829 = vpop.f32.mrb[0].mxu0
        %v830 = vadd.f32 0.0, %v829
        %v831 = vpop.f32.mrb[0].mxu0
        %832 = vdwg.mxu0
        %v833 = vld [vmem:[%s4] sm:$0x1]
        %v835 = vlaneseq
        %v836 = vshrl.u32 %v835, 7
        %v837 = vsub.s32 0, %v836
        %v838 = vrot.slane %v833, %v837
        %v840 = vmul.f32 %v811, %v838
        %v841 = vmul.f32 %v814, %v838
        %v842 = vmul.f32 %v819, %v838
        %v843 = vmul.f32 %v822, %v838
        %v844 = vmul.f32 %v827, %v838
        %v845 = vmul.f32 %v830, %v838
        %v846 = vld [vmem:[%s5] sm:$0x1]
        %v848 = vlaneseq
        %v849 = vshrl.u32 %v848, 7
        %v850 = vsub.s32 0, %v849
        %v851 = vrot.slane %v846, %v850
        %v853 = vadd.f32 %v840, %v851
        %v854 = vadd.f32 %v841, %v851
        %v855 = vadd.f32 %v842, %v851
        %v856 = vadd.f32 %v843, %v851
        %v857 = vadd.f32 %v844, %v851
        %v858 = vadd.f32 %v845, %v851
        %v859 = vmax.f32 %v853, 0.0
        %v860 = vmax.f32 %v854, 0.0
        %v861 = vmax.f32 %v855, 0.0
        %v862 = vmax.f32 %v856, 0.0
        %v863 = vmax.f32 %v857, 0.0
        %v864 = vmax.f32 %v858, 0.0
        %p865 = scmp.eq.s32.totalorder %s42, 0
        %s866 = scalar_select %p865, 0.0, 1.0
        %p867 = scmp.eq.s32.totalorder %s42, 1
        %s868 = scalar_select %p867, 0.0, 1.0
        %v869 = vstv %s866
        %v870 = vmul.f32 %v859, %v869
        %v871 = vstv %s868
        %v872 = vmul.f32 %v864, %v871
        %v879 = vrot.slane %v870, 7
        %v880 = vrot.slane %v860, 7
        %v881 = vrot.slane %v861, 7
        %v882 = vrot.slane %v862, 7
        %v883 = vrot.slane %v863, 7
        %v884 = vrot.slane %v872, 7
        %vm891 = vcmask 1040384
        %v892 = vsel %vm891, 0.0, %v879
        %v893 = vsel %vm891, 0.0, %v880
        %v894 = vsel %vm891, 0.0, %v881
        %v895 = vsel %vm891, 0.0, %v882
        %v896 = vsel %vm891, 0.0, %v883
        %v897 = vsel %vm891, 0.0, %v884
        %v898 = vsel %vm891, %v879, 0.0
        %v899 = vsel %vm891, %v880, 0.0
        %v900 = vsel %vm891, %v881, 0.0
        %v901 = vsel %vm891, %v882, 0.0
        %v902 = vsel %vm891, %v883, 0.0
        %v903 = vsel %vm891, %v884, 0.0
        %vm912 = vcmask 1046528
        %v913 = vrot.slane %v892, 1
        %v914 = vrot.slane %v898, 1
        %v915 = vsel %vm912, %v913, %v914
        %v916 = vrot.slane %v893, 1
        %v917 = vrot.slane %v899, 1
        %v918 = vsel %vm912, %v916, %v917
        %v919 = vrot.slane %v894, 1
        %v920 = vrot.slane %v900, 1
        %v921 = vsel %vm912, %v919, %v920
        %v922 = vrot.slane %v895, 1
        %v923 = vrot.slane %v901, 1
        %v924 = vsel %vm912, %v922, %v923
        %vm929 = vcmask 1045504
        %v930 = vrot.slane %v892, 2
        %v931 = vrot.slane %v898, 2
        %v932 = vsel %vm929, %v930, %v931
        %v933 = vrot.slane %v893, 2
        %v934 = vrot.slane %v899, 2
        %v935 = vsel %vm929, %v933, %v934
        %v936 = vrot.slane %v894, 2
        %v937 = vrot.slane %v900, 2
        %v938 = vsel %vm929, %v936, %v937
        %v939 = vrot.slane %v895, 2
        %v940 = vrot.slane %v901, 2
        %v941 = vsel %vm929, %v939, %v940
        %v946 = vpack.c.bf16 %v893, %v892
        %v947 = vpack.c.bf16 %v918, %v915
        %v948 = vpack.c.bf16 %v935, %v932
        %v949 = vpack.c.bf16 %v895, %v894
        %v950 = vpack.c.bf16 %v924, %v921
        %v951 = vpack.c.bf16 %v941, %v938
        %v952 = vld [vmem:[#allocation11] sm:$0xf]
        %v953 = vld [vmem:[#allocation11 + $0x4] sm:$0xf]
        %v954 = vld [vmem:[#allocation11 + $0x8] sm:$0xf]
        %v955 = vld [vmem:[#allocation11 + $0xc] sm:$0xf]
        %v956 = vld [vmem:[#allocation11 + $0x10] sm:$0xf]
        %v957 = vld [vmem:[#allocation11 + $0x14] sm:$0xf]
        %v958 = vld [vmem:[#allocation11 + $0x18] sm:$0xf]
        %v959 = vld [vmem:[#allocation11 + $0x1c] sm:$0xf]
        %v960 = vld [vmem:[#allocation11 + $0x20] sm:$0xf]
        %v961 = vld [vmem:[#allocation11 + $0x24] sm:$0xf]
        %v962 = vld [vmem:[#allocation11 + $0x28] sm:$0xf]
        %v963 = vld [vmem:[#allocation11 + $0x2c] sm:$0xf]
        %v964 = vld [vmem:[#allocation11 + $0x30] sm:$0xf]
        %v965 = vld [vmem:[#allocation11 + $0x34] sm:$0xf]
        %v966 = vld [vmem:[#allocation11 + $0x38] sm:$0xf]
        %v967 = vld [vmem:[#allocation11 + $0x3c] sm:$0xf]
        %v968 = vld [vmem:[#allocation11 + $0x40] sm:$0xf]
        %v969 = vld [vmem:[#allocation11 + $0x44] sm:$0xf]
        %v970 = vld [vmem:[#allocation11 + $0x48] sm:$0xf]
        %v971 = vld [vmem:[#allocation11 + $0x4c] sm:$0xf]
        %v972 = vld [vmem:[#allocation11 + $0x50] sm:$0xf]
        %v973 = vld [vmem:[#allocation11 + $0x54] sm:$0xf]
        %v974 = vld [vmem:[#allocation11 + $0x58] sm:$0xf]
        %v975 = vld [vmem:[#allocation11 + $0x5c] sm:$0xf]
        %v976 = vld [vmem:[#allocation11 + $0x60] sm:$0xf]
        %v977 = vld [vmem:[#allocation11 + $0x64] sm:$0xf]
        %v978 = vld [vmem:[#allocation11 + $0x68] sm:$0xf]
        %v979 = vld [vmem:[#allocation11 + $0x6c] sm:$0xf]
        %v980 = vld [vmem:[#allocation11 + $0x70] sm:$0xf]
        %v981 = vld [vmem:[#allocation11 + $0x74] sm:$0xf]
        %v982 = vld [vmem:[#allocation11 + $0x78] sm:$0xf]
        %v983 = vld [vmem:[#allocation11 + $0x7c] sm:$0xf]
        %v984 = vld [vmem:[#allocation11 + $0x80] sm:$0xf]
        %v985 = vld [vmem:[#allocation11 + $0x84] sm:$0xf]
        %v986 = vld [vmem:[#allocation11 + $0x88] sm:$0xf]
        %v987 = vld [vmem:[#allocation11 + $0x8c] sm:$0xf]
        %v988 = vld [vmem:[#allocation11 + $0x90] sm:$0xf]
        %v989 = vld [vmem:[#allocation11 + $0x94] sm:$0xf]
        %v990 = vld [vmem:[#allocation11 + $0x98] sm:$0xf]
        %v991 = vld [vmem:[#allocation11 + $0x9c] sm:$0xf]
        %v992 = vld [vmem:[#allocation11 + $0xa0] sm:$0xf]
        %v993 = vld [vmem:[#allocation11 + $0xa4] sm:$0xf]
        %v994 = vld [vmem:[#allocation11 + $0xa8] sm:$0xf]
        %v995 = vld [vmem:[#allocation11 + $0xac] sm:$0xf]
        %v996 = vld [vmem:[#allocation11 + $0xb0] sm:$0xf]
        %v997 = vld [vmem:[#allocation11 + $0xb4] sm:$0xf]
        %v998 = vld [vmem:[#allocation11 + $0xb8] sm:$0xf]
        %v999 = vld [vmem:[#allocation11 + $0xbc] sm:$0xf]
        %v1048 = vunpack.c.l.b16 %v952
        %v1049 = vunpack.c.l.b16 %v953
        %v1050 = vunpack.c.l.b16 %v954
        %v1051 = vunpack.c.l.b16 %v955
        %v1052 = vunpack.c.l.b16 %v956
        %v1053 = vunpack.c.l.b16 %v957
        %v1054 = vunpack.c.l.b16 %v958
        %v1055 = vunpack.c.l.b16 %v959
        %v1056 = vunpack.c.l.b16 %v960
        %v1057 = vunpack.c.l.b16 %v961
        %v1058 = vunpack.c.l.b16 %v962
        %v1059 = vunpack.c.l.b16 %v963
        %v1060 = vunpack.c.l.b16 %v964
        %v1061 = vunpack.c.l.b16 %v965
        %v1062 = vunpack.c.l.b16 %v966
        %v1063 = vunpack.c.l.b16 %v967
        %v1064 = vunpack.c.l.b16 %v968
        %v1065 = vunpack.c.l.b16 %v969
        %v1066 = vunpack.c.l.b16 %v970
        %v1067 = vunpack.c.l.b16 %v971
        %v1068 = vunpack.c.l.b16 %v972
        %v1069 = vunpack.c.l.b16 %v973
        %v1070 = vunpack.c.l.b16 %v974
        %v1071 = vunpack.c.l.b16 %v975
        %v1072 = vunpack.c.l.b16 %v976
        %v1073 = vunpack.c.l.b16 %v977
        %v1074 = vunpack.c.l.b16 %v978
        %v1075 = vunpack.c.l.b16 %v979
        %v1076 = vunpack.c.l.b16 %v980
        %v1077 = vunpack.c.l.b16 %v981
        %v1078 = vunpack.c.l.b16 %v982
        %v1079 = vunpack.c.l.b16 %v983
        %v1080 = vunpack.c.l.b16 %v984
        %v1081 = vunpack.c.l.b16 %v985
        %v1082 = vunpack.c.l.b16 %v986
        %v1083 = vunpack.c.l.b16 %v987
        %v1084 = vunpack.c.l.b16 %v988
        %v1085 = vunpack.c.l.b16 %v989
        %v1086 = vunpack.c.l.b16 %v990
        %v1087 = vunpack.c.l.b16 %v991
        %v1088 = vunpack.c.l.b16 %v992
        %v1089 = vunpack.c.l.b16 %v993
        %v1090 = vunpack.c.l.b16 %v994
        %v1091 = vunpack.c.l.b16 %v995
        %v1092 = vunpack.c.l.b16 %v996
        %v1093 = vunpack.c.l.b16 %v997
        %v1094 = vunpack.c.l.b16 %v998
        %v1095 = vunpack.c.l.b16 %v999
        %v1096 = vpack.c.b16 %v1049, %v1048
        %v1097 = vpack.c.b16 %v1051, %v1050
        %v1098 = vpack.c.b16 %v1053, %v1052
        %v1099 = vpack.c.b16 %v1055, %v1054
        %v1100 = vpack.c.b16 %v1057, %v1056
        %v1101 = vpack.c.b16 %v1059, %v1058
        %v1102 = vpack.c.b16 %v1061, %v1060
        %v1103 = vpack.c.b16 %v1063, %v1062
        %v1104 = vpack.c.b16 %v1065, %v1064
        %v1105 = vpack.c.b16 %v1067, %v1066
        %v1106 = vpack.c.b16 %v1069, %v1068
        %v1107 = vpack.c.b16 %v1071, %v1070
        %v1108 = vpack.c.b16 %v1073, %v1072
        %v1109 = vpack.c.b16 %v1075, %v1074
        %v1110 = vpack.c.b16 %v1077, %v1076
        %v1111 = vpack.c.b16 %v1079, %v1078
        %v1112 = vpack.c.b16 %v1081, %v1080
        %v1113 = vpack.c.b16 %v1083, %v1082
        %v1114 = vpack.c.b16 %v1085, %v1084
        %v1115 = vpack.c.b16 %v1087, %v1086
        %v1116 = vpack.c.b16 %v1089, %v1088
        %v1117 = vpack.c.b16 %v1091, %v1090
        %v1118 = vpack.c.b16 %v1093, %v1092
        %v1119 = vpack.c.b16 %v1095, %v1094
        %1144 = vmatprep.subr.bf16.mxu0 0
        %1145 = vmatpush1.bf16.msra.mxu0 %v1096
        %1146 = vmatprep.subr.bf16.mxu0 0
        %1147 = vmatpush1.bf16.msra.mxu0 %v1097
        %1148 = vmatprep.subr.bf16.mxu0 0
        %1149 = vmatpush1.bf16.msra.mxu0 %v1098
        %1150 = vmatprep.subr.bf16.mxu0 0
        %1151 = vmatpush1.bf16.msra.mxu0 %v1099
        %1152 = vmatprep.subr.bf16.mxu0 0
        %1153 = vmatpush1.bf16.msra.mxu0 %v1100
        %1154 = vmatprep.subr.bf16.mxu0 0
        %1155 = vmatpush1.bf16.msra.mxu0 %v1101
        %1156 = vmatprep.subr.bf16.mxu0 0
        %1157 = vmatpush1.bf16.msra.mxu0 %v1102
        %1158 = vmatprep.subr.bf16.mxu0 0
        %1159 = vmatpush1.bf16.msra.mxu0 %v1103
        %1160 = vmatprep.subr.bf16.mxu0 0
        %1161 = vmatpush1.bf16.msra.mxu0 %v1104
        %1162 = vmatprep.subr.bf16.mxu0 0
        %1163 = vmatpush1.bf16.msra.mxu0 %v1105
        %1164 = vmatprep.subr.bf16.mxu0 0
        %1165 = vmatpush1.bf16.msra.mxu0 %v1106
        %1166 = vmatprep.subr.bf16.mxu0 0
        %1167 = vmatpush1.bf16.msra.mxu0 %v1107
        %1168 = vmatprep.subr.bf16.mxu0 0
        %1169 = vmatpush1.bf16.msra.mxu0 %v1108
        %1170 = vmatprep.subr.bf16.mxu0 0
        %1171 = vmatpush1.bf16.msra.mxu0 %v1109
        %1172 = vmatprep.subr.bf16.mxu0 0
        %1173 = vmatpush1.bf16.msra.mxu0 %v1110
        %1174 = vmatprep.subr.bf16.mxu0 0
        %1175 = vmatpush1.bf16.msra.mxu0 %v1111
        %1176 = vmatprep.mubr.bf16.mxu0 %v947
        %1177 = vmatmul.mubr.bf16.gmra.mrb[0].mxu0 %v946
        %v1178 = vpop.f32.mrb[0].mxu0
        %v1179 = vadd.f32 0.0, %v1178
        %v1180 = vpop.f32.mrb[0].mxu0
        %v1181 = vpop.f32.mrb[0].mxu0
        %v1182 = vadd.f32 0.0, %v1181
        %v1183 = vpop.f32.mrb[0].mxu0
        %1184 = vmatprep.mubr.bf16.mxu0 %v950
        %1185 = vmatmul.mubr.bf16.gmra.mrb[0].mxu0 %v949
        %v1186 = vpop.f32.mrb[0].mxu0
        %v1187 = vadd.f32 0.0, %v1186
        %v1188 = vpop.f32.mrb[0].mxu0
        %v1189 = vpop.f32.mrb[0].mxu0
        %v1190 = vadd.f32 0.0, %v1189
        %v1191 = vpop.f32.mrb[0].mxu0
        %1192 = vdwg.mxu0
        %1193 = vmatprep.subr.bf16.mxu0 0
        %1194 = vmatpush1.bf16.msra.mxu0 %v1112
        %1195 = vmatprep.subr.bf16.mxu0 0
        %1196 = vmatpush1.bf16.msra.mxu0 %v1113
        %1197 = vmatprep.subr.bf16.mxu0 0
        %1198 = vmatpush1.bf16.msra.mxu0 %v1114
        %1199 = vmatprep.subr.bf16.mxu0 0
        %1200 = vmatpush1.bf16.msra.mxu0 %v1115
        %1201 = vmatprep.subr.bf16.mxu0 0
        %1202 = vmatpush1.bf16.msra.mxu0 %v1116
        %1203 = vmatprep.subr.bf16.mxu0 0
        %1204 = vmatpush1.bf16.msra.mxu0 %v1117
        %1205 = vmatprep.subr.bf16.mxu0 0
        %1206 = vmatpush1.bf16.msra.mxu0 %v1118
        %1207 = vmatprep.subr.bf16.mxu0 0
        %1208 = vmatpush1.bf16.msra.mxu0 %v1119
        %1209 = vmatprep.subr.bf16.mxu0 0
        %1210 = vmatpush1.bf16.msra.mxu0 0
        %1211 = vmatprep.subr.bf16.mxu0 0
        %1212 = vmatpush1.bf16.msra.mxu0 0
        %1213 = vmatprep.subr.bf16.mxu0 0
        %1214 = vmatpush1.bf16.msra.mxu0 0
        %1215 = vmatprep.subr.bf16.mxu0 0
        %1216 = vmatpush1.bf16.msra.mxu0 0
        %1217 = vmatprep.subr.bf16.mxu0 0
        %1218 = vmatpush1.bf16.msra.mxu0 0
        %1219 = vmatprep.subr.bf16.mxu0 0
        %1220 = vmatpush1.bf16.msra.mxu0 0
        %1221 = vmatprep.subr.bf16.mxu0 0
        %1222 = vmatpush1.bf16.msra.mxu0 0
        %1223 = vmatprep.subr.bf16.mxu0 0
        %1224 = vmatpush1.bf16.msra.mxu0 0
        %1225 = vmatprep.mubr.bf16.mxu0 0
        %1226 = vmatmul.mubr.bf16.gmra.mrb[0].mxu0 %v948
        %v1227 = vpop.f32.mrb[0].mxu0
        %v1228 = vadd.f32 %v1179, %v1227
        %v1229 = vpop.f32.mrb[0].mxu0
        %v1230 = vpop.f32.mrb[0].mxu0
        %v1231 = vadd.f32 %v1182, %v1230
        %v1232 = vpop.f32.mrb[0].mxu0
        %1233 = vmatprep.mubr.bf16.mxu0 0
        %1234 = vmatmul.mubr.bf16.gmra.mrb[0].mxu0 %v951
        %v1235 = vpop.f32.mrb[0].mxu0
        %v1236 = vadd.f32 %v1187, %v1235
        %v1237 = vpop.f32.mrb[0].mxu0
        %v1238 = vpop.f32.mrb[0].mxu0
        %v1239 = vadd.f32 %v1190, %v1238
        %v1240 = vpop.f32.mrb[0].mxu0
        %1241 = vdwg.mxu0
        %1242 = vst [vmem:[#allocation2] sm:$0xff] %v1228
        %1243 = vst [vmem:[#allocation2 + $0x8] sm:$0xff] %v1231
        %1244 = vst [vmem:[#allocation2 + $0x10] sm:$0xff] %v1236
        %1245 = vst [vmem:[#allocation2 + $0x18] sm:$0xff] %v1239
        %v1248 = vrot.slane %v896, 1
        %v1249 = vrot.slane %v902, 1
        %v1250 = vsel %vm912, %v1248, %v1249
        %v1252 = vrot.slane %v896, 2
        %v1253 = vrot.slane %v902, 2
        %v1254 = vsel %vm929, %v1252, %v1253
        %v1256 = vpack.c.bf16 %v894, %v893
        %v1257 = vpack.c.bf16 %v921, %v918
        %v1258 = vpack.c.bf16 %v938, %v935
        %v1259 = vpack.c.bf16 %v896, %v895
        %v1260 = vpack.c.bf16 %v1250, %v924
        %v1261 = vpack.c.bf16 %v1254, %v941
        %s1262 = scalar_lea.vmem [#allocation11], 192
        %v1263 = vld [vmem:[%s1262] sm:$0xf]
        %v1264 = vld [vmem:[%s1262 + $0x4] sm:$0xf]
        %v1265 = vld [vmem:[%s1262 + $0x8] sm:$0xf]
        %v1266 = vld [vmem:[%s1262 + $0xc] sm:$0xf]
        %v1267 = vld [vmem:[%s1262 + $0x10] sm:$0xf]
        %v1268 = vld [vmem:[%s1262 + $0x14] sm:$0xf]
        %v1269 = vld [vmem:[%s1262 + $0x18] sm:$0xf]
        %v1270 = vld [vmem:[%s1262 + $0x1c] sm:$0xf]
        %v1271 = vld [vmem:[%s1262 + $0x20] sm:$0xf]
        %v1272 = vld [vmem:[%s1262 + $0x24] sm:$0xf]
        %v1273 = vld [vmem:[%s1262 + $0x28] sm:$0xf]
        %v1274 = vld [vmem:[%s1262 + $0x2c] sm:$0xf]
        %v1275 = vld [vmem:[%s1262 + $0x30] sm:$0xf]
        %v1276 = vld [vmem:[%s1262 + $0x34] sm:$0xf]
        %v1277 = vld [vmem:[%s1262 + $0x38] sm:$0xf]
        %v1278 = vld [vmem:[%s1262 + $0x3c] sm:$0xf]
        %v1279 = vld [vmem:[%s1262 + $0x40] sm:$0xf]
        %v1280 = vld [vmem:[%s1262 + $0x44] sm:$0xf]
        %v1281 = vld [vmem:[%s1262 + $0x48] sm:$0xf]
        %v1282 = vld [vmem:[%s1262 + $0x4c] sm:$0xf]
        %v1283 = vld [vmem:[%s1262 + $0x50] sm:$0xf]
        %v1284 = vld [vmem:[%s1262 + $0x54] sm:$0xf]
        %v1285 = vld [vmem:[%s1262 + $0x58] sm:$0xf]
        %v1286 = vld [vmem:[%s1262 + $0x5c] sm:$0xf]
        %v1287 = vld [vmem:[%s1262 + $0x60] sm:$0xf]
        %v1288 = vld [vmem:[%s1262 + $0x64] sm:$0xf]
        %v1289 = vld [vmem:[%s1262 + $0x68] sm:$0xf]
        %v1290 = vld [vmem:[%s1262 + $0x6c] sm:$0xf]
        %v1291 = vld [vmem:[%s1262 + $0x70] sm:$0xf]
        %v1292 = vld [vmem:[%s1262 + $0x74] sm:$0xf]
        %v1293 = vld [vmem:[%s1262 + $0x78] sm:$0xf]
        %v1294 = vld [vmem:[%s1262 + $0x7c] sm:$0xf]
        %v1295 = vld [vmem:[%s1262 + $0x80] sm:$0xf]
        %v1296 = vld [vmem:[%s1262 + $0x84] sm:$0xf]
        %v1297 = vld [vmem:[%s1262 + $0x88] sm:$0xf]
        %v1298 = vld [vmem:[%s1262 + $0x8c] sm:$0xf]
        %v1299 = vld [vmem:[%s1262 + $0x90] sm:$0xf]
        %v1300 = vld [vmem:[%s1262 + $0x94] sm:$0xf]
        %v1301 = vld [vmem:[%s1262 + $0x98] sm:$0xf]
        %v1302 = vld [vmem:[%s1262 + $0x9c] sm:$0xf]
        %v1303 = vld [vmem:[%s1262 + $0xa0] sm:$0xf]
        %v1304 = vld [vmem:[%s1262 + $0xa4] sm:$0xf]
        %v1305 = vld [vmem:[%s1262 + $0xa8] sm:$0xf]
        %v1306 = vld [vmem:[%s1262 + $0xac] sm:$0xf]
        %v1307 = vld [vmem:[%s1262 + $0xb0] sm:$0xf]
        %v1308 = vld [vmem:[%s1262 + $0xb4] sm:$0xf]
        %v1309 = vld [vmem:[%s1262 + $0xb8] sm:$0xf]
        %v1310 = vld [vmem:[%s1262 + $0xbc] sm:$0xf]
        %v1359 = vunpack.c.l.b16 %v1263
        %v1360 = vunpack.c.l.b16 %v1264
        %v1361 = vunpack.c.l.b16 %v1265
        %v1362 = vunpack.c.l.b16 %v1266
        %v1363 = vunpack.c.l.b16 %v1267
        %v1364 = vunpack.c.l.b16 %v1268
        %v1365 = vunpack.c.l.b16 %v1269
        %v1366 = vunpack.c.l.b16 %v1270
        %v1367 = vunpack.c.l.b16 %v1271
        %v1368 = vunpack.c.l.b16 %v1272
        %v1369 = vunpack.c.l.b16 %v1273
        %v1370 = vunpack.c.l.b16 %v1274
        %v1371 = vunpack.c.l.b16 %v1275
        %v1372 = vunpack.c.l.b16 %v1276
        %v1373 = vunpack.c.l.b16 %v1277
        %v1374 = vunpack.c.l.b16 %v1278
        %v1375 = vunpack.c.l.b16 %v1279
        %v1376 = vunpack.c.l.b16 %v1280
        %v1377 = vunpack.c.l.b16 %v1281
        %v1378 = vunpack.c.l.b16 %v1282
        %v1379 = vunpack.c.l.b16 %v1283
        %v1380 = vunpack.c.l.b16 %v1284
        %v1381 = vunpack.c.l.b16 %v1285
        %v1382 = vunpack.c.l.b16 %v1286
        %v1383 = vunpack.c.l.b16 %v1287
        %v1384 = vunpack.c.l.b16 %v1288
        %v1385 = vunpack.c.l.b16 %v1289
        %v1386 = vunpack.c.l.b16 %v1290
        %v1387 = vunpack.c.l.b16 %v1291
        %v1388 = vunpack.c.l.b16 %v1292
        %v1389 = vunpack.c.l.b16 %v1293
        %v1390 = vunpack.c.l.b16 %v1294
        %v1391 = vunpack.c.l.b16 %v1295
        %v1392 = vunpack.c.l.b16 %v1296
        %v1393 = vunpack.c.l.b16 %v1297
        %v1394 = vunpack.c.l.b16 %v1298
        %v1395 = vunpack.c.l.b16 %v1299
        %v1396 = vunpack.c.l.b16 %v1300
        %v1397 = vunpack.c.l.b16 %v1301
        %v1398 = vunpack.c.l.b16 %v1302
        %v1399 = vunpack.c.l.b16 %v1303
        %v1400 = vunpack.c.l.b16 %v1304
        %v1401 = vunpack.c.l.b16 %v1305
        %v1402 = vunpack.c.l.b16 %v1306
        %v1403 = vunpack.c.l.b16 %v1307
        %v1404 = vunpack.c.l.b16 %v1308
        %v1405 = vunpack.c.l.b16 %v1309
        %v1406 = vunpack.c.l.b16 %v1310
        %v1407 = vpack.c.b16 %v1360, %v1359
        %v1408 = vpack.c.b16 %v1362, %v1361
        %v1409 = vpack.c.b16 %v1364, %v1363
        %v1410 = vpack.c.b16 %v1366, %v1365
        %v1411 = vpack.c.b16 %v1368, %v1367
        %v1412 = vpack.c.b16 %v1370, %v1369
        %v1413 = vpack.c.b16 %v1372, %v1371
        %v1414 = vpack.c.b16 %v1374, %v1373
        %v1415 = vpack.c.b16 %v1376, %v1375
        %v1416 = vpack.c.b16 %v1378, %v1377
        %v1417 = vpack.c.b16 %v1380, %v1379
        %v1418 = vpack.c.b16 %v1382, %v1381
        %v1419 = vpack.c.b16 %v1384, %v1383
        %v1420 = vpack.c.b16 %v1386, %v1385
        %v1421 = vpack.c.b16 %v1388, %v1387
        %v1422 = vpack.c.b16 %v1390, %v1389
        %v1423 = vpack.c.b16 %v1392, %v1391
        %v1424 = vpack.c.b16 %v1394, %v1393
        %v1425 = vpack.c.b16 %v1396, %v1395
        %v1426 = vpack.c.b16 %v1398, %v1397
        %v1427 = vpack.c.b16 %v1400, %v1399
        %v1428 = vpack.c.b16 %v1402, %v1401
        %v1429 = vpack.c.b16 %v1404, %v1403
        %v1430 = vpack.c.b16 %v1406, %v1405
        %1455 = vmatprep.subr.bf16.mxu0 0
        %1456 = vmatpush1.bf16.msra.mxu0 %v1407
        %1457 = vmatprep.subr.bf16.mxu0 0
        %1458 = vmatpush1.bf16.msra.mxu0 %v1408
        %1459 = vmatprep.subr.bf16.mxu0 0
        %1460 = vmatpush1.bf16.msra.mxu0 %v1409
        %1461 = vmatprep.subr.bf16.mxu0 0
        %1462 = vmatpush1.bf16.msra.mxu0 %v1410
        %1463 = vmatprep.subr.bf16.mxu0 0
        %1464 = vmatpush1.bf16.msra.mxu0 %v1411
        %1465 = vmatprep.subr.bf16.mxu0 0
        %1466 = vmatpush1.bf16.msra.mxu0 %v1412
        %1467 = vmatprep.subr.bf16.mxu0 0
        %1468 = vmatpush1.bf16.msra.mxu0 %v1413
        %1469 = vmatprep.subr.bf16.mxu0 0
        %1470 = vmatpush1.bf16.msra.mxu0 %v1414
        %1471 = vmatprep.subr.bf16.mxu0 0
        %1472 = vmatpush1.bf16.msra.mxu0 %v1415
        %1473 = vmatprep.subr.bf16.mxu0 0
        %1474 = vmatpush1.bf16.msra.mxu0 %v1416
        %1475 = vmatprep.subr.bf16.mxu0 0
        %1476 = vmatpush1.bf16.msra.mxu0 %v1417
        %1477 = vmatprep.subr.bf16.mxu0 0
        %1478 = vmatpush1.bf16.msra.mxu0 %v1418
        %1479 = vmatprep.subr.bf16.mxu0 0
        %1480 = vmatpush1.bf16.msra.mxu0 %v1419
        %1481 = vmatprep.subr.bf16.mxu0 0
        %1482 = vmatpush1.bf16.msra.mxu0 %v1420
        %1483 = vmatprep.subr.bf16.mxu0 0
        %1484 = vmatpush1.bf16.msra.mxu0 %v1421
        %1485 = vmatprep.subr.bf16.mxu0 0
        %1486 = vmatpush1.bf16.msra.mxu0 %v1422
        %1487 = vmatprep.mubr.bf16.mxu0 %v1257
        %1488 = vmatmul.mubr.bf16.gmra.mrb[0].mxu0 %v1256
        %v1489 = vpop.f32.mrb[0].mxu0
        %v1490 = vadd.f32 0.0, %v1489
        %v1491 = vpop.f32.mrb[0].mxu0
        %v1492 = vpop.f32.mrb[0].mxu0
        %v1493 = vadd.f32 0.0, %v1492
        %v1494 = vpop.f32.mrb[0].mxu0
        %1495 = vmatprep.mubr.bf16.mxu0 %v1260
        %1496 = vmatmul.mubr.bf16.gmra.mrb[0].mxu0 %v1259
        %v1497 = vpop.f32.mrb[0].mxu0
        %v1498 = vadd.f32 0.0, %v1497
        %v1499 = vpop.f32.mrb[0].mxu0
        %v1500 = vpop.f32.mrb[0].mxu0
        %v1501 = vadd.f32 0.0, %v1500
        %v1502 = vpop.f32.mrb[0].mxu0
        %1503 = vdwg.mxu0
        %1504 = vmatprep.subr.bf16.mxu0 0
        %1505 = vmatpush1.bf16.msra.mxu0 %v1423
        %1506 = vmatprep.subr.bf16.mxu0 0
        %1507 = vmatpush1.bf16.msra.mxu0 %v1424
        %1508 = vmatprep.subr.bf16.mxu0 0
        %1509 = vmatpush1.bf16.msra.mxu0 %v1425
        %1510 = vmatprep.subr.bf16.mxu0 0
        %1511 = vmatpush1.bf16.msra.mxu0 %v1426
        %1512 = vmatprep.subr.bf16.mxu0 0
        %1513 = vmatpush1.bf16.msra.mxu0 %v1427
        %1514 = vmatprep.subr.bf16.mxu0 0
        %1515 = vmatpush1.bf16.msra.mxu0 %v1428
        %1516 = vmatprep.subr.bf16.mxu0 0
        %1517 = vmatpush1.bf16.msra.mxu0 %v1429
        %1518 = vmatprep.subr.bf16.mxu0 0
        %1519 = vmatpush1.bf16.msra.mxu0 %v1430
        %1520 = vmatprep.subr.bf16.mxu0 0
        %1521 = vmatpush1.bf16.msra.mxu0 0
        %1522 = vmatprep.subr.bf16.mxu0 0
        %1523 = vmatpush1.bf16.msra.mxu0 0
        %1524 = vmatprep.subr.bf16.mxu0 0
        %1525 = vmatpush1.bf16.msra.mxu0 0
        %1526 = vmatprep.subr.bf16.mxu0 0
        %1527 = vmatpush1.bf16.msra.mxu0 0
        %1528 = vmatprep.subr.bf16.mxu0 0
        %1529 = vmatpush1.bf16.msra.mxu0 0
        %1530 = vmatprep.subr.bf16.mxu0 0
        %1531 = vmatpush1.bf16.msra.mxu0 0
        %1532 = vmatprep.subr.bf16.mxu0 0
        %1533 = vmatpush1.bf16.msra.mxu0 0
        %1534 = vmatprep.subr.bf16.mxu0 0
        %1535 = vmatpush1.bf16.msra.mxu0 0
        %1536 = vmatprep.mubr.bf16.mxu0 0
        %1537 = vmatmul.mubr.bf16.gmra.mrb[0].mxu0 %v1258
        %v1538 = vpop.f32.mrb[0].mxu0
        %v1539 = vadd.f32 %v1490, %v1538
        %v1540 = vpop.f32.mrb[0].mxu0
        %v1541 = vpop.f32.mrb[0].mxu0
        %v1542 = vadd.f32 %v1493, %v1541
        %v1543 = vpop.f32.mrb[0].mxu0
        %1544 = vmatprep.mubr.bf16.mxu0 0
        %1545 = vmatmul.mubr.bf16.gmra.mrb[0].mxu0 %v1261
        %v1546 = vpop.f32.mrb[0].mxu0
        %v1547 = vadd.f32 %v1498, %v1546
        %v1548 = vpop.f32.mrb[0].mxu0
        %v1549 = vpop.f32.mrb[0].mxu0
        %v1550 = vadd.f32 %v1501, %v1549
        %v1551 = vpop.f32.mrb[0].mxu0
        %1552 = vdwg.mxu0
        %v1553 = vld [vmem:[#allocation2] sm:$0xff]
        %v1554 = vld [vmem:[#allocation2 + $0x8] sm:$0xff]
        %v1555 = vld [vmem:[#allocation2 + $0x10] sm:$0xff]
        %v1556 = vld [vmem:[#allocation2 + $0x18] sm:$0xff]
        %v1557 = vadd.f32 %v1553, %v1539
        %v1558 = vadd.f32 %v1554, %v1542
        %v1559 = vadd.f32 %v1555, %v1547
        %v1560 = vadd.f32 %v1556, %v1550
        %1561 = vst [vmem:[#allocation2] sm:$0xff] %v1557
        %1562 = vst [vmem:[#allocation2 + $0x8] sm:$0xff] %v1558
        %1563 = vst [vmem:[#allocation2 + $0x10] sm:$0xff] %v1559
        %1564 = vst [vmem:[#allocation2 + $0x18] sm:$0xff] %v1560
        %v1567 = vrot.slane %v897, 1
        %v1568 = vrot.slane %v903, 1
        %v1569 = vsel %vm912, %v1567, %v1568
        %v1571 = vrot.slane %v897, 2
        %v1572 = vrot.slane %v903, 2
        %v1573 = vsel %vm929, %v1571, %v1572
        %v1575 = vpack.c.bf16 %v897, %v896
        %v1576 = vpack.c.bf16 %v1569, %v1250
        %v1577 = vpack.c.bf16 %v1573, %v1254
        %s1578 = scalar_lea.vmem [#allocation11], 384
        %v1579 = vld [vmem:[%s1578] sm:$0xf]
        %v1580 = vld [vmem:[%s1578 + $0x4] sm:$0xf]
        %v1581 = vld [vmem:[%s1578 + $0x8] sm:$0xf]
        %v1582 = vld [vmem:[%s1578 + $0xc] sm:$0xf]
        %v1583 = vld [vmem:[%s1578 + $0x10] sm:$0xf]
        %v1584 = vld [vmem:[%s1578 + $0x14] sm:$0xf]
        %v1585 = vld [vmem:[%s1578 + $0x18] sm:$0xf]
        %v1586 = vld [vmem:[%s1578 + $0x1c] sm:$0xf]
        %v1587 = vld [vmem:[%s1578 + $0x20] sm:$0xf]
        %v1588 = vld [vmem:[%s1578 + $0x24] sm:$0xf]
        %v1589 = vld [vmem:[%s1578 + $0x28] sm:$0xf]
        %v1590 = vld [vmem:[%s1578 + $0x2c] sm:$0xf]
        %v1591 = vld [vmem:[%s1578 + $0x30] sm:$0xf]
        %v1592 = vld [vmem:[%s1578 + $0x34] sm:$0xf]
        %v1593 = vld [vmem:[%s1578 + $0x38] sm:$0xf]
        %v1594 = vld [vmem:[%s1578 + $0x3c] sm:$0xf]
        %v1595 = vld [vmem:[%s1578 + $0x40] sm:$0xf]
        %v1596 = vld [vmem:[%s1578 + $0x44] sm:$0xf]
        %v1597 = vld [vmem:[%s1578 + $0x48] sm:$0xf]
        %v1598 = vld [vmem:[%s1578 + $0x4c] sm:$0xf]
        %v1599 = vld [vmem:[%s1578 + $0x50] sm:$0xf]
        %v1600 = vld [vmem:[%s1578 + $0x54] sm:$0xf]
        %v1601 = vld [vmem:[%s1578 + $0x58] sm:$0xf]
        %v1602 = vld [vmem:[%s1578 + $0x5c] sm:$0xf]
        %v1603 = vld [vmem:[%s1578 + $0x60] sm:$0xf]
        %v1604 = vld [vmem:[%s1578 + $0x64] sm:$0xf]
        %v1605 = vld [vmem:[%s1578 + $0x68] sm:$0xf]
        %v1606 = vld [vmem:[%s1578 + $0x6c] sm:$0xf]
        %v1607 = vld [vmem:[%s1578 + $0x70] sm:$0xf]
        %v1608 = vld [vmem:[%s1578 + $0x74] sm:$0xf]
        %v1609 = vld [vmem:[%s1578 + $0x78] sm:$0xf]
        %v1610 = vld [vmem:[%s1578 + $0x7c] sm:$0xf]
        %v1611 = vld [vmem:[%s1578 + $0x80] sm:$0xf]
        %v1612 = vld [vmem:[%s1578 + $0x84] sm:$0xf]
        %v1613 = vld [vmem:[%s1578 + $0x88] sm:$0xf]
        %v1614 = vld [vmem:[%s1578 + $0x8c] sm:$0xf]
        %v1615 = vld [vmem:[%s1578 + $0x90] sm:$0xf]
        %v1616 = vld [vmem:[%s1578 + $0x94] sm:$0xf]
        %v1617 = vld [vmem:[%s1578 + $0x98] sm:$0xf]
        %v1618 = vld [vmem:[%s1578 + $0x9c] sm:$0xf]
        %v1619 = vld [vmem:[%s1578 + $0xa0] sm:$0xf]
        %v1620 = vld [vmem:[%s1578 + $0xa4] sm:$0xf]
        %v1621 = vld [vmem:[%s1578 + $0xa8] sm:$0xf]
        %v1622 = vld [vmem:[%s1578 + $0xac] sm:$0xf]
        %v1623 = vld [vmem:[%s1578 + $0xb0] sm:$0xf]
        %v1624 = vld [vmem:[%s1578 + $0xb4] sm:$0xf]
        %v1625 = vld [vmem:[%s1578 + $0xb8] sm:$0xf]
        %v1626 = vld [vmem:[%s1578 + $0xbc] sm:$0xf]
        %v1675 = vunpack.c.l.b16 %v1579
        %v1676 = vunpack.c.l.b16 %v1580
        %v1677 = vunpack.c.l.b16 %v1581
        %v1678 = vunpack.c.l.b16 %v1582
        %v1679 = vunpack.c.l.b16 %v1583
        %v1680 = vunpack.c.l.b16 %v1584
        %v1681 = vunpack.c.l.b16 %v1585
        %v1682 = vunpack.c.l.b16 %v1586
        %v1683 = vunpack.c.l.b16 %v1587
        %v1684 = vunpack.c.l.b16 %v1588
        %v1685 = vunpack.c.l.b16 %v1589
        %v1686 = vunpack.c.l.b16 %v1590
        %v1687 = vunpack.c.l.b16 %v1591
        %v1688 = vunpack.c.l.b16 %v1592
        %v1689 = vunpack.c.l.b16 %v1593
        %v1690 = vunpack.c.l.b16 %v1594
        %v1691 = vunpack.c.l.b16 %v1595
        %v1692 = vunpack.c.l.b16 %v1596
        %v1693 = vunpack.c.l.b16 %v1597
        %v1694 = vunpack.c.l.b16 %v1598
        %v1695 = vunpack.c.l.b16 %v1599
        %v1696 = vunpack.c.l.b16 %v1600
        %v1697 = vunpack.c.l.b16 %v1601
        %v1698 = vunpack.c.l.b16 %v1602
        %v1699 = vunpack.c.l.b16 %v1603
        %v1700 = vunpack.c.l.b16 %v1604
        %v1701 = vunpack.c.l.b16 %v1605
        %v1702 = vunpack.c.l.b16 %v1606
        %v1703 = vunpack.c.l.b16 %v1607
        %v1704 = vunpack.c.l.b16 %v1608
        %v1705 = vunpack.c.l.b16 %v1609
        %v1706 = vunpack.c.l.b16 %v1610
        %v1707 = vunpack.c.l.b16 %v1611
        %v1708 = vunpack.c.l.b16 %v1612
        %v1709 = vunpack.c.l.b16 %v1613
        %v1710 = vunpack.c.l.b16 %v1614
        %v1711 = vunpack.c.l.b16 %v1615
        %v1712 = vunpack.c.l.b16 %v1616
        %v1713 = vunpack.c.l.b16 %v1617
        %v1714 = vunpack.c.l.b16 %v1618
        %v1715 = vunpack.c.l.b16 %v1619
        %v1716 = vunpack.c.l.b16 %v1620
        %v1717 = vunpack.c.l.b16 %v1621
        %v1718 = vunpack.c.l.b16 %v1622
        %v1719 = vunpack.c.l.b16 %v1623
        %v1720 = vunpack.c.l.b16 %v1624
        %v1721 = vunpack.c.l.b16 %v1625
        %v1722 = vunpack.c.l.b16 %v1626
        %v1723 = vpack.c.b16 %v1676, %v1675
        %v1724 = vpack.c.b16 %v1678, %v1677
        %v1725 = vpack.c.b16 %v1680, %v1679
        %v1726 = vpack.c.b16 %v1682, %v1681
        %v1727 = vpack.c.b16 %v1684, %v1683
        %v1728 = vpack.c.b16 %v1686, %v1685
        %v1729 = vpack.c.b16 %v1688, %v1687
        %v1730 = vpack.c.b16 %v1690, %v1689
        %v1731 = vpack.c.b16 %v1692, %v1691
        %v1732 = vpack.c.b16 %v1694, %v1693
        %v1733 = vpack.c.b16 %v1696, %v1695
        %v1734 = vpack.c.b16 %v1698, %v1697
        %v1735 = vpack.c.b16 %v1700, %v1699
        %v1736 = vpack.c.b16 %v1702, %v1701
        %v1737 = vpack.c.b16 %v1704, %v1703
        %v1738 = vpack.c.b16 %v1706, %v1705
        %v1739 = vpack.c.b16 %v1708, %v1707
        %v1740 = vpack.c.b16 %v1710, %v1709
        %v1741 = vpack.c.b16 %v1712, %v1711
        %v1742 = vpack.c.b16 %v1714, %v1713
        %v1743 = vpack.c.b16 %v1716, %v1715
        %v1744 = vpack.c.b16 %v1718, %v1717
        %v1745 = vpack.c.b16 %v1720, %v1719
        %v1746 = vpack.c.b16 %v1722, %v1721
        %1771 = vmatprep.subr.bf16.mxu0 0
        %1772 = vmatpush1.bf16.msra.mxu0 %v1723
        %1773 = vmatprep.subr.bf16.mxu0 0
        %1774 = vmatpush1.bf16.msra.mxu0 %v1724
        %1775 = vmatprep.subr.bf16.mxu0 0
        %1776 = vmatpush1.bf16.msra.mxu0 %v1725
        %1777 = vmatprep.subr.bf16.mxu0 0
        %1778 = vmatpush1.bf16.msra.mxu0 %v1726
        %1779 = vmatprep.subr.bf16.mxu0 0
        %1780 = vmatpush1.bf16.msra.mxu0 %v1727
        %1781 = vmatprep.subr.bf16.mxu0 0
        %1782 = vmatpush1.bf16.msra.mxu0 %v1728
        %1783 = vmatprep.subr.bf16.mxu0 0
        %1784 = vmatpush1.bf16.msra.mxu0 %v1729
        %1785 = vmatprep.subr.bf16.mxu0 0
        %1786 = vmatpush1.bf16.msra.mxu0 %v1730
        %1787 = vmatprep.subr.bf16.mxu0 0
        %1788 = vmatpush1.bf16.msra.mxu0 %v1731
        %1789 = vmatprep.subr.bf16.mxu0 0
        %1790 = vmatpush1.bf16.msra.mxu0 %v1732
        %1791 = vmatprep.subr.bf16.mxu0 0
        %1792 = vmatpush1.bf16.msra.mxu0 %v1733
        %1793 = vmatprep.subr.bf16.mxu0 0
        %1794 = vmatpush1.bf16.msra.mxu0 %v1734
        %1795 = vmatprep.subr.bf16.mxu0 0
        %1796 = vmatpush1.bf16.msra.mxu0 %v1735
        %1797 = vmatprep.subr.bf16.mxu0 0
        %1798 = vmatpush1.bf16.msra.mxu0 %v1736
        %1799 = vmatprep.subr.bf16.mxu0 0
        %1800 = vmatpush1.bf16.msra.mxu0 %v1737
        %1801 = vmatprep.subr.bf16.mxu0 0
        %1802 = vmatpush1.bf16.msra.mxu0 %v1738
        %1803 = vmatprep.mubr.bf16.mxu0 %v950
        %1804 = vmatmul.mubr.bf16.gmra.mrb[0].mxu0 %v949
        %v1805 = vpop.f32.mrb[0].mxu0
        %v1806 = vadd.f32 0.0, %v1805
        %v1807 = vpop.f32.mrb[0].mxu0
        %v1808 = vpop.f32.mrb[0].mxu0
        %v1809 = vadd.f32 0.0, %v1808
        %v1810 = vpop.f32.mrb[0].mxu0
        %1811 = vmatprep.mubr.bf16.mxu0 %v1576
        %1812 = vmatmul.mubr.bf16.gmra.mrb[0].mxu0 %v1575
        %v1813 = vpop.f32.mrb[0].mxu0
        %v1814 = vadd.f32 0.0, %v1813
        %v1815 = vpop.f32.mrb[0].mxu0
        %v1816 = vpop.f32.mrb[0].mxu0
        %v1817 = vadd.f32 0.0, %v1816
        %v1818 = vpop.f32.mrb[0].mxu0
        %1819 = vdwg.mxu0
        %1820 = vmatprep.subr.bf16.mxu0 0
        %1821 = vmatpush1.bf16.msra.mxu0 %v1739
        %1822 = vmatprep.subr.bf16.mxu0 0
        %1823 = vmatpush1.bf16.msra.mxu0 %v1740
        %1824 = vmatprep.subr.bf16.mxu0 0
        %1825 = vmatpush1.bf16.msra.mxu0 %v1741
        %1826 = vmatprep.subr.bf16.mxu0 0
        %1827 = vmatpush1.bf16.msra.mxu0 %v1742
        %1828 = vmatprep.subr.bf16.mxu0 0
        %1829 = vmatpush1.bf16.msra.mxu0 %v1743
        %1830 = vmatprep.subr.bf16.mxu0 0
        %1831 = vmatpush1.bf16.msra.mxu0 %v1744
        %1832 = vmatprep.subr.bf16.mxu0 0
        %1833 = vmatpush1.bf16.msra.mxu0 %v1745
        %1834 = vmatprep.subr.bf16.mxu0 0
        %1835 = vmatpush1.bf16.msra.mxu0 %v1746
        %1836 = vmatprep.subr.bf16.mxu0 0
        %1837 = vmatpush1.bf16.msra.mxu0 0
        %1838 = vmatprep.subr.bf16.mxu0 0
        %1839 = vmatpush1.bf16.msra.mxu0 0
        %1840 = vmatprep.subr.bf16.mxu0 0
        %1841 = vmatpush1.bf16.msra.mxu0 0
        %1842 = vmatprep.subr.bf16.mxu0 0
        %1843 = vmatpush1.bf16.msra.mxu0 0
        %1844 = vmatprep.subr.bf16.mxu0 0
        %1845 = vmatpush1.bf16.msra.mxu0 0
        %1846 = vmatprep.subr.bf16.mxu0 0
        %1847 = vmatpush1.bf16.msra.mxu0 0
        %1848 = vmatprep.subr.bf16.mxu0 0
        %1849 = vmatpush1.bf16.msra.mxu0 0
        %1850 = vmatprep.subr.bf16.mxu0 0
        %1851 = vmatpush1.bf16.msra.mxu0 0
        %1852 = vmatprep.mubr.bf16.mxu0 0
        %1853 = vmatmul.mubr.bf16.gmra.mrb[0].mxu0 %v951
        %v1854 = vpop.f32.mrb[0].mxu0
        %v1855 = vadd.f32 %v1806, %v1854
        %v1856 = vpop.f32.mrb[0].mxu0
        %v1857 = vpop.f32.mrb[0].mxu0
        %v1858 = vadd.f32 %v1809, %v1857
        %v1859 = vpop.f32.mrb[0].mxu0
        %1860 = vmatprep.mubr.bf16.mxu0 0
        %1861 = vmatmul.mubr.bf16.gmra.mrb[0].mxu0 %v1577
        %v1862 = vpop.f32.mrb[0].mxu0
        %v1863 = vadd.f32 %v1814, %v1862
        %v1864 = vpop.f32.mrb[0].mxu0
        %v1865 = vpop.f32.mrb[0].mxu0
        %v1866 = vadd.f32 %v1817, %v1865
        %v1867 = vpop.f32.mrb[0].mxu0
        %1868 = vdwg.mxu0
        %v1869 = vld [vmem:[#allocation2] sm:$0xff]
        %v1870 = vld [vmem:[#allocation2 + $0x8] sm:$0xff]
        %v1871 = vld [vmem:[#allocation2 + $0x10] sm:$0xff]
        %v1872 = vld [vmem:[#allocation2 + $0x18] sm:$0xff]
        %v1873 = vadd.f32 %v1869, %v1855
        %v1874 = vadd.f32 %v1870, %v1858
        %v1875 = vadd.f32 %v1871, %v1863
        %v1876 = vadd.f32 %v1872, %v1866
        %1877 = vst [vmem:[#allocation2] sm:$0xff] %v1873
        %1878 = vst [vmem:[#allocation2 + $0x8] sm:$0xff] %v1874
        %1879 = vst [vmem:[#allocation2 + $0x10] sm:$0xff] %v1875
        %1880 = vst [vmem:[#allocation2 + $0x18] sm:$0xff] %v1876
        %v1881 = vld [vmem:[#allocation2] sm:$0xff]
        %v1882 = vld [vmem:[#allocation2 + $0x8] sm:$0xff]
        %v1883 = vld [vmem:[#allocation2 + $0x10] sm:$0xff]
        %v1884 = vld [vmem:[#allocation2 + $0x18] sm:$0xff]
        %v1885 = vld [vmem:[%s7] sm:$0x1]
        %v1887 = vlaneseq
        %v1888 = vshrl.u32 %v1887, 7
        %v1889 = vsub.s32 0, %v1888
        %v1890 = vrot.slane %v1885, %v1889
        %v1892 = vmul.f32 %v1881, %v1890
        %v1893 = vmul.f32 %v1882, %v1890
        %v1894 = vmul.f32 %v1883, %v1890
        %v1895 = vmul.f32 %v1884, %v1890
        %v1896 = vld [vmem:[%s8] sm:$0x1]
        %v1898 = vlaneseq
        %v1899 = vshrl.u32 %v1898, 7
        %v1900 = vsub.s32 0, %v1899
        %v1901 = vrot.slane %v1896, %v1900
        %v1903 = vadd.f32 %v1892, %v1901
        %v1904 = vadd.f32 %v1893, %v1901
        %v1905 = vadd.f32 %v1894, %v1901
        %v1906 = vadd.f32 %v1895, %v1901
        %v1907 = vmax.f32 %v1903, 0.0
        %v1908 = vmax.f32 %v1904, 0.0
        %v1909 = vmax.f32 %v1905, 0.0
        %v1910 = vmax.f32 %v1906, 0.0
        %v1911 = vpack.c.bf16 %v1908, %v1907
        %v1912 = vpack.c.bf16 %v1910, %v1909
        %v1913 = vld [vmem:[#allocation12] sm:$0xf]
        %v1914 = vld [vmem:[#allocation12 + $0x4] sm:$0xf]
        %v1915 = vld [vmem:[#allocation12 + $0x8] sm:$0xf]
        %v1916 = vld [vmem:[#allocation12 + $0xc] sm:$0xf]
        %v1917 = vld [vmem:[#allocation12 + $0x10] sm:$0xf]
        %v1918 = vld [vmem:[#allocation12 + $0x14] sm:$0xf]
        %v1919 = vld [vmem:[#allocation12 + $0x18] sm:$0xf]
        %v1920 = vld [vmem:[#allocation12 + $0x1c] sm:$0xf]
        %v1921 = vld [vmem:[#allocation12 + $0x20] sm:$0xf]
        %v1922 = vld [vmem:[#allocation12 + $0x24] sm:$0xf]
        %v1923 = vld [vmem:[#allocation12 + $0x28] sm:$0xf]
        %v1924 = vld [vmem:[#allocation12 + $0x2c] sm:$0xf]
        %v1925 = vld [vmem:[#allocation12 + $0x30] sm:$0xf]
        %v1926 = vld [vmem:[#allocation12 + $0x34] sm:$0xf]
        %v1927 = vld [vmem:[#allocation12 + $0x38] sm:$0xf]
        %v1928 = vld [vmem:[#allocation12 + $0x3c] sm:$0xf]
        %v1945 = vunpack.c.l.b16 %v1913
        %v1946 = vunpack.c.l.b16 %v1914
        %v1947 = vunpack.c.l.b16 %v1915
        %v1948 = vunpack.c.l.b16 %v1916
        %v1949 = vunpack.c.l.b16 %v1917
        %v1950 = vunpack.c.l.b16 %v1918
        %v1951 = vunpack.c.l.b16 %v1919
        %v1952 = vunpack.c.l.b16 %v1920
        %v1953 = vunpack.c.l.b16 %v1921
        %v1954 = vunpack.c.l.b16 %v1922
        %v1955 = vunpack.c.l.b16 %v1923
        %v1956 = vunpack.c.l.b16 %v1924
        %v1957 = vunpack.c.l.b16 %v1925
        %v1958 = vunpack.c.l.b16 %v1926
        %v1959 = vunpack.c.l.b16 %v1927
        %v1960 = vunpack.c.l.b16 %v1928
        %v1961 = vpack.c.b16 %v1946, %v1945
        %v1962 = vpack.c.b16 %v1948, %v1947
        %v1963 = vpack.c.b16 %v1950, %v1949
        %v1964 = vpack.c.b16 %v1952, %v1951
        %v1965 = vpack.c.b16 %v1954, %v1953
        %v1966 = vpack.c.b16 %v1956, %v1955
        %v1967 = vpack.c.b16 %v1958, %v1957
        %v1968 = vpack.c.b16 %v1960, %v1959
        %1977 = vmatprep.subr.bf16.mxu0 0
        %1978 = vmatpush1.bf16.msra.mxu0 %v1961
        %1979 = vmatprep.subr.bf16.mxu0 0
        %1980 = vmatpush1.bf16.msra.mxu0 %v1962
        %1981 = vmatprep.subr.bf16.mxu0 0
        %1982 = vmatpush1.bf16.msra.mxu0 %v1963
        %1983 = vmatprep.subr.bf16.mxu0 0
        %1984 = vmatpush1.bf16.msra.mxu0 %v1964
        %1985 = vmatprep.subr.bf16.mxu0 0
        %1986 = vmatpush1.bf16.msra.mxu0 %v1965
        %1987 = vmatprep.subr.bf16.mxu0 0
        %1988 = vmatpush1.bf16.msra.mxu0 %v1966
        %1989 = vmatprep.subr.bf16.mxu0 0
        %1990 = vmatpush1.bf16.msra.mxu0 %v1967
        %1991 = vmatprep.subr.bf16.mxu0 0
        %1992 = vmatpush1.bf16.msra.mxu0 %v1968
        %1993 = vmatprep.subr.bf16.mxu0 0
        %1994 = vmatpush1.bf16.msra.mxu0 0
        %1995 = vmatprep.subr.bf16.mxu0 0
        %1996 = vmatpush1.bf16.msra.mxu0 0
        %1997 = vmatprep.subr.bf16.mxu0 0
        %1998 = vmatpush1.bf16.msra.mxu0 0
        %1999 = vmatprep.subr.bf16.mxu0 0
        %2000 = vmatpush1.bf16.msra.mxu0 0
        %2001 = vmatprep.subr.bf16.mxu0 0
        %2002 = vmatpush1.bf16.msra.mxu0 0
        %2003 = vmatprep.subr.bf16.mxu0 0
        %2004 = vmatpush1.bf16.msra.mxu0 0
        %2005 = vmatprep.subr.bf16.mxu0 0
        %2006 = vmatpush1.bf16.msra.mxu0 0
        %2007 = vmatprep.subr.bf16.mxu0 0
        %2008 = vmatpush1.bf16.msra.mxu0 0
        %2009 = vmatprep.mubr.bf16.mxu0 0
        %2010 = vmatmul.mubr.bf16.gmra.mrb[0].mxu0 %v1911
        %v2011 = vpop.f32.mrb[0].mxu0
        %v2012 = vadd.f32 0.0, %v2011
        %v2013 = vpop.f32.mrb[0].mxu0
        %v2014 = vpop.f32.mrb[0].mxu0
        %v2015 = vadd.f32 0.0, %v2014
        %v2016 = vpop.f32.mrb[0].mxu0
        %2017 = vmatprep.mubr.bf16.mxu0 0
        %2018 = vmatmul.mubr.bf16.gmra.mrb[0].mxu0 %v1912
        %v2019 = vpop.f32.mrb[0].mxu0
        %v2020 = vadd.f32 0.0, %v2019
        %v2021 = vpop.f32.mrb[0].mxu0
        %v2022 = vpop.f32.mrb[0].mxu0
        %v2023 = vadd.f32 0.0, %v2022
        %v2024 = vpop.f32.mrb[0].mxu0
        %2025 = vdwg.mxu0
        %v2026 = vld [vmem:[%s10] sm:$0x1]
        %v2028 = vlaneseq
        %v2029 = vshrl.u32 %v2028, 7
        %v2030 = vsub.s32 0, %v2029
        %v2031 = vrot.slane %v2026, %v2030
        %v2033 = vmul.f32 %v2012, %v2031
        %v2034 = vmul.f32 %v2015, %v2031
        %v2035 = vmul.f32 %v2020, %v2031
        %v2036 = vmul.f32 %v2023, %v2031
        %v2037 = vld [vmem:[%s11] sm:$0x1]
        %v2039 = vlaneseq
        %v2040 = vshrl.u32 %v2039, 7
        %v2041 = vsub.s32 0, %v2040
        %v2042 = vrot.slane %v2037, %v2041
        %v2044 = vadd.f32 %v2033, %v2042
        %v2045 = vadd.f32 %v2034, %v2042
        %v2046 = vadd.f32 %v2035, %v2042
        %v2047 = vadd.f32 %v2036, %v2042
        %v2048 = vpack.c.bf16 %v704, %v703
        %v2049 = vpack.c.bf16 %v706, %v705
        %v2050 = vld [vmem:[#allocation14] sm:$0xf]
        %v2051 = vld [vmem:[#allocation14 + $0x4] sm:$0xf]
        %v2052 = vld [vmem:[#allocation14 + $0x8] sm:$0xf]
        %v2053 = vld [vmem:[#allocation14 + $0xc] sm:$0xf]
        %v2054 = vld [vmem:[#allocation14 + $0x10] sm:$0xf]
        %v2055 = vld [vmem:[#allocation14 + $0x14] sm:$0xf]
        %v2056 = vld [vmem:[#allocation14 + $0x18] sm:$0xf]
        %v2057 = vld [vmem:[#allocation14 + $0x1c] sm:$0xf]
        %v2058 = vld [vmem:[#allocation14 + $0x20] sm:$0xf]
        %v2059 = vld [vmem:[#allocation14 + $0x24] sm:$0xf]
        %v2060 = vld [vmem:[#allocation14 + $0x28] sm:$0xf]
        %v2061 = vld [vmem:[#allocation14 + $0x2c] sm:$0xf]
        %v2062 = vld [vmem:[#allocation14 + $0x30] sm:$0xf]
        %v2063 = vld [vmem:[#allocation14 + $0x34] sm:$0xf]
        %v2064 = vld [vmem:[#allocation14 + $0x38] sm:$0xf]
        %v2065 = vld [vmem:[#allocation14 + $0x3c] sm:$0xf]
        %v2082 = vunpack.c.l.b16 %v2050
        %v2083 = vunpack.c.l.b16 %v2051
        %v2084 = vunpack.c.l.b16 %v2052
        %v2085 = vunpack.c.l.b16 %v2053
        %v2086 = vunpack.c.l.b16 %v2054
        %v2087 = vunpack.c.l.b16 %v2055
        %v2088 = vunpack.c.l.b16 %v2056
        %v2089 = vunpack.c.l.b16 %v2057
        %v2090 = vunpack.c.l.b16 %v2058
        %v2091 = vunpack.c.l.b16 %v2059
        %v2092 = vunpack.c.l.b16 %v2060
        %v2093 = vunpack.c.l.b16 %v2061
        %v2094 = vunpack.c.l.b16 %v2062
        %v2095 = vunpack.c.l.b16 %v2063
        %v2096 = vunpack.c.l.b16 %v2064
        %v2097 = vunpack.c.l.b16 %v2065
        %v2098 = vpack.c.b16 %v2083, %v2082
        %v2099 = vpack.c.b16 %v2085, %v2084
        %v2100 = vpack.c.b16 %v2087, %v2086
        %v2101 = vpack.c.b16 %v2089, %v2088
        %v2102 = vpack.c.b16 %v2091, %v2090
        %v2103 = vpack.c.b16 %v2093, %v2092
        %v2104 = vpack.c.b16 %v2095, %v2094
        %v2105 = vpack.c.b16 %v2097, %v2096
        %2114 = vmatprep.subr.bf16.mxu0 0
        %2115 = vmatpush1.bf16.msra.mxu0 %v2098
        %2116 = vmatprep.subr.bf16.mxu0 0
        %2117 = vmatpush1.bf16.msra.mxu0 %v2099
        %2118 = vmatprep.subr.bf16.mxu0 0
        %2119 = vmatpush1.bf16.msra.mxu0 %v2100
        %2120 = vmatprep.subr.bf16.mxu0 0
        %2121 = vmatpush1.bf16.msra.mxu0 %v2101
        %2122 = vmatprep.subr.bf16.mxu0 0
        %2123 = vmatpush1.bf16.msra.mxu0 %v2102
        %2124 = vmatprep.subr.bf16.mxu0 0
        %2125 = vmatpush1.bf16.msra.mxu0 %v2103
        %2126 = vmatprep.subr.bf16.mxu0 0
        %2127 = vmatpush1.bf16.msra.mxu0 %v2104
        %2128 = vmatprep.subr.bf16.mxu0 0
        %2129 = vmatpush1.bf16.msra.mxu0 %v2105
        %2130 = vmatprep.subr.bf16.mxu0 0
        %2131 = vmatpush1.bf16.msra.mxu0 0
        %2132 = vmatprep.subr.bf16.mxu0 0
        %2133 = vmatpush1.bf16.msra.mxu0 0
        %2134 = vmatprep.subr.bf16.mxu0 0
        %2135 = vmatpush1.bf16.msra.mxu0 0
        %2136 = vmatprep.subr.bf16.mxu0 0
        %2137 = vmatpush1.bf16.msra.mxu0 0
        %2138 = vmatprep.subr.bf16.mxu0 0
        %2139 = vmatpush1.bf16.msra.mxu0 0
        %2140 = vmatprep.subr.bf16.mxu0 0
        %2141 = vmatpush1.bf16.msra.mxu0 0
        %2142 = vmatprep.subr.bf16.mxu0 0
        %2143 = vmatpush1.bf16.msra.mxu0 0
        %2144 = vmatprep.subr.bf16.mxu0 0
        %2145 = vmatpush1.bf16.msra.mxu0 0
        %2146 = vmatprep.mubr.bf16.mxu0 0
        %2147 = vmatmul.mubr.bf16.gmra.mrb[0].mxu0 %v2048
        %v2148 = vpop.f32.mrb[0].mxu0
        %v2149 = vadd.f32 0.0, %v2148
        %v2150 = vpop.f32.mrb[0].mxu0
        %v2151 = vpop.f32.mrb[0].mxu0
        %v2152 = vadd.f32 0.0, %v2151
        %v2153 = vpop.f32.mrb[0].mxu0
        %2154 = vmatprep.mubr.bf16.mxu0 0
        %2155 = vmatmul.mubr.bf16.gmra.mrb[0].mxu0 %v2049
        %v2156 = vpop.f32.mrb[0].mxu0
        %v2157 = vadd.f32 0.0, %v2156
        %v2158 = vpop.f32.mrb[0].mxu0
        %v2159 = vpop.f32.mrb[0].mxu0
        %v2160 = vadd.f32 0.0, %v2159
        %v2161 = vpop.f32.mrb[0].mxu0
        %2162 = vdwg.mxu0
        %v2163 = vld [vmem:[%s13] sm:$0x1]
        %v2165 = vlaneseq
        %v2166 = vshrl.u32 %v2165, 7
        %v2167 = vsub.s32 0, %v2166
        %v2168 = vrot.slane %v2163, %v2167
        %v2170 = vmul.f32 %v2149, %v2168
        %v2171 = vmul.f32 %v2152, %v2168
        %v2172 = vmul.f32 %v2157, %v2168
        %v2173 = vmul.f32 %v2160, %v2168
        %v2174 = vld [vmem:[%s14] sm:$0x1]
        %v2176 = vlaneseq
        %v2177 = vshrl.u32 %v2176, 7
        %v2178 = vsub.s32 0, %v2177
        %v2179 = vrot.slane %v2174, %v2178
        %v2181 = vadd.f32 %v2170, %v2179
        %v2182 = vadd.f32 %v2171, %v2179
        %v2183 = vadd.f32 %v2172, %v2179
        %v2184 = vadd.f32 %v2173, %v2179
        %v2185 = vadd.f32 %v2044, %v2181
        %v2186 = vadd.f32 %v2045, %v2182
        %v2187 = vadd.f32 %v2046, %v2183
        %v2188 = vadd.f32 %v2047, %v2184
        %v2189 = vmax.f32 %v2185, 0.0
        %v2190 = vmax.f32 %v2186, 0.0
        %v2191 = vmax.f32 %v2187, 0.0
        %v2192 = vmax.f32 %v2188, 0.0
        %2193 = vst [vmem:[%s691] sm:$0xff] %v2189
        %2194 = vst [vmem:[%s691 + $0x8] sm:$0xff] %v2190
        %2195 = vst [vmem:[%s691 + $0x10] sm:$0xff] %v2191
        %2196 = vst [vmem:[%s691 + $0x18] sm:$0xff] %v2192
        %s2197 = sand.u32 %s411, 1
        %s2198 = scalar_lea.sflag [#allocation5], %s2197
        %s2199 = sand.u32 %s411, 1
        %s2200 = smul.addr %s2199, 32
        %s2201 = scalar_lea.vmem [#allocation15], %s2200
        // Predicated region
        $region109: #{tpu_custom_call.1} parent=79 // pred_check
          %p2202 = pneg %p421
        $region110: #{tpu_custom_call.1} parent=79 // pred_check_branch
          %2204 = sbr.rel (%p2202) target = $region112
        $region111: #{tpu_custom_call.1} parent=79 // pred_region
          %s2205 = smul.u32 4, %s42
          %s2207 = ssub.s32 512, 512
          %2208 = vsyncadd %s2198, %s2207
          %s2209 = smul.addr %s41, 8
          %s2210 = sadd.s32 %s2205, %s2209
          %s2211 = smul.addr %s2210, 128
          %s2212 = scalar_lea.hbm %s15, %s2211
          %s2213 = sshll.u32 %s2201, 4
          %s2214 = int_to_ptr.vmem [resolvable:$true] %s2213
          %2219 = dma.vmem_to_hbm [thread:$0]  %s2214, 512, %s2212, %s2198, 128, 128, 8
        $region112: #{tpu_custom_call.1} parent=79 // pred_fallthru
          _
      $region80: #{tpu_custom_call.1} parent=5 // pred_fallthru
        _
      %p2220 = scmp.le.s32.totalorder 2, %s32
      // Predicated region
      $region113: #{tpu_custom_call.1} parent=5 // pred_check
        %p2221 = pneg %p2220
      $region114: #{tpu_custom_call.1} parent=5 // pred_check_branch
        %2223 = sbr.rel (%p2221) target = $region116
      $region115: #{tpu_custom_call.1} parent=5 // pred_region
        %s2224 = ssub.s32 %s32, 2
        // Predicated region
        $region117: #{tpu_custom_call.1} parent=115 // pred_check
          %p2225 = pneg %p427
        $region118: #{tpu_custom_call.1} parent=115 // pred_check_branch
          %2227 = sbr.rel (%p2225) target = $region120
        $region119: #{tpu_custom_call.1} parent=115 // pred_region
          %s2228 = sand.u32 %s412, 1
          %s2229 = scalar_lea.sflag [#allocation5], %s2228
          %s2230 = sand.u32 %s412, 1
          %s2231 = smul.addr %s2230, 32
          %s2232 = scalar_lea.vmem [#allocation15], %s2231
          %2233 = dma.done %s2229, 512
        $region120: #{tpu_custom_call.1} parent=115 // pred_fallthru
          _
      $region116: #{tpu_custom_call.1} parent=5 // pred_fallthru
        _
    $region6: #{tpu_custom_call.1} parent=1 // loop_footer
      %s36 = sadd.s32 1, %s32
    $region7: #{tpu_custom_call.1} parent=1 // loop_footer_branch
      %31 = sbr.rel target = $region3
    $region8: #{tpu_custom_call.1} parent=1 // loop_exit
      _
    %2234 = vsyncpa [#allocation4], 1
    %s2235 = scalar_lea.sflag [#allocation4], 1
    %2236 = vsyncpa %s2235, 1
    %2237 = vsyncpa [#allocation7], 1
    %s2238 = scalar_lea.sflag [#allocation7], 1
    %2239 = vsyncpa %s2238, 1
    %2240 = vsyncpa [#allocation10], 1
    %2241 = vsyncpa [#allocation13], 1
    %2242 = vsyncpa [#allocation5], 1
    %s2243 = scalar_lea.sflag [#allocation5], 1
    %2244 = vsyncpa %s2243, 1

</llo_original>
